<compile_context>
chip_gen: v5e
topology: v5e:2x2
jax: 0.10.0
libtpu: 0.0.40
codegen_flags: <defaults>
</compile_context>

<pallas_src>
import jax
import jax.numpy as jnp
from jax.experimental import pallas as pl
from jax.experimental.pallas import tpu as pltpu


def _sigmoid(x):
    return 1.0 / (1.0 + jnp.exp(-x))


def decoder_step_kernel(ids_ref, hidden_ref, ctx_ref, maskb_ref,
                        emb_ref, attn_w_ref, attn_wt_ref, attn_b_ref,
                        wxe_ref, wxw_ref, wh_ref, bx_ref, bh_ref,
                        out_wt_ref, out_b_ref,
                        logits_ref, hidden_out_ref):
    f32 = jnp.float32
    h = hidden_ref[...].astype(f32)            # (Bt, E)
    ctx = ctx_ref[...].astype(f32)             # (Bt, S, 2E)  (bf16 input upcast here)
    mask_bias = maskb_ref[...]                 # (Bt, S)   0 / -1e30 additive bias

    bt = h.shape[0]
    n_class = emb_ref.shape[0]

    # ---- embedding lookup via one-hot matmul (fine for small vocabularies) ----
    # TODO(synk): for large n_class replace with a scalar-prefetch + pl.Element
    # row-gather instead of the one-hot matmul.
    ids = ids_ref[...]                                            # (Bt, 1) int32
    iota = jax.lax.broadcasted_iota(jnp.int32, (bt, n_class), 1)  # (Bt, n_class)
    onehot = (iota == ids).astype(f32)
    emb = jnp.dot(onehot, emb_ref[...], preferred_element_type=f32)   # (Bt, E)

    # ---- attention: proj = ctx @ W^T + b is never materialized ----
    attn_w = attn_w_ref[...]        # (E, 2E)   original layout -> h @ W, no transpose
    attn_wt = attn_wt_ref[...]      # (2E, E)   pre-transposed on host
    attn_b = attn_b_ref[...]        # (1, E)

    h_w = jnp.dot(h, attn_w, preferred_element_type=f32)          # (Bt, 2E)
    h_b = jnp.sum(h * attn_b, axis=-1, keepdims=True)             # (Bt, 1)
    energy = jnp.sum(h_w[:, None, :] * ctx, axis=-1) + h_b + mask_bias   # (Bt, S)

    m = jnp.max(energy, axis=-1, keepdims=True)
    p = jnp.exp(energy - m)
    denom = jnp.sum(p, axis=-1, keepdims=True)
    attn = p * pl.reciprocal(denom, approx=True)                  # (Bt, S)

    ctx_sum = jnp.sum(attn[:, :, None] * ctx, axis=1)             # (Bt, 2E)
    weighted = jnp.dot(ctx_sum, attn_wt, preferred_element_type=f32) + attn_b  # (Bt, E)

    # ---- GRU cell, PyTorch gate order (r, z, n); concat avoided by split weights ----
    def gates(g):
        gx = (jnp.dot(emb, wxe_ref[g], preferred_element_type=f32)
              + jnp.dot(weighted, wxw_ref[g], preferred_element_type=f32)
              + bx_ref[g])
        gh = jnp.dot(h, wh_ref[g], preferred_element_type=f32) + bh_ref[g]
        return gx, gh

    rx, rh = gates(0)
    zx, zh = gates(1)
    nx, nh = gates(2)
    r = _sigmoid(rx + rh)
    z = _sigmoid(zx + zh)
    n = jnp.tanh(nx + r * nh)
    h_new = (1.0 - z) * n + z * h                                 # (Bt, E)

    # ---- output projection ----
    logits = jnp.dot(h_new, out_wt_ref[...], preferred_element_type=f32) + out_b_ref[...]
    logits_ref[...] = logits.astype(logits_ref.dtype)
    hidden_out_ref[...] = h_new.astype(hidden_out_ref.dtype)


def decoder_gru_forward(trg_input, hidden, contexts, src_input, params,
                        padding_idx, *, batch_tile=8):
    B, S, two_e = contexts.shape
    E = hidden.shape[-1]
    assert two_e == 2 * E
    n_class = params["emb"].shape[0]

    bt = int(batch_tile)
    b_pad = ((B + bt - 1) // bt) * bt
    pad = b_pad - B

    ids2 = trg_input.reshape(B, 1).astype(jnp.int32)
    h2 = hidden.reshape(B, E)
    mask_bias = jnp.where(src_input == padding_idx,
                          jnp.float32(-1e30), jnp.float32(0.0))
    ctx = contexts
    if pad:
        ids2 = jnp.pad(ids2, ((0, pad), (0, 0)))
        h2 = jnp.pad(h2, ((0, pad), (0, 0)))
        ctx = jnp.pad(ctx, ((0, pad), (0, 0), (0, 0)))
        mask_bias = jnp.pad(mask_bias, ((0, pad), (0, 0)))

    # ---- host-side parameter plumbing: all transposes / gate splits happen once here ----
    attn_w = params["attn_w"]                    # (E, 2E)
    attn_wt = attn_w.T                           # (2E, E)
    attn_b = params["attn_b"].reshape(1, E)

    wih, whh = params["gru_wih"], params["gru_whh"]    # (3E, 2E), (3E, E)
    bih, bhh = params["gru_bih"], params["gru_bhh"]    # (3E,), (3E,)
    wxe = jnp.stack([wih[g * E:(g + 1) * E, :E].T for g in range(3)])          # (3, E, E)
    wxw = jnp.stack([wih[g * E:(g + 1) * E, E:].T for g in range(3)])          # (3, E, E)
    wh = jnp.stack([whh[g * E:(g + 1) * E, :].T for g in range(3)])            # (3, E, E)
    bx = jnp.stack([bih[g * E:(g + 1) * E].reshape(1, E) for g in range(3)])   # (3, 1, E)
    bh = jnp.stack([bhh[g * E:(g + 1) * E].reshape(1, E) for g in range(3)])   # (3, 1, E)

    out_wt = params["out_w"].T                   # (E, n_class)
    out_b = params["out_b"].reshape(1, n_class)

    bcast2 = lambda shp: pl.BlockSpec(shp, lambda i: (0, 0))
    bcast3 = lambda shp: pl.BlockSpec(shp, lambda i: (0, 0, 0))

    logits, h_new = pl.pallas_call(
        decoder_step_kernel,
        out_shape=(
            jax.ShapeDtypeStruct((b_pad, n_class), jnp.float32),
            jax.ShapeDtypeStruct((b_pad, E), jnp.float32),
        ),
        grid_spec=pltpu.PrefetchScalarGridSpec(
            num_scalar_prefetch=0,
            grid=(b_pad // bt,),
            in_specs=[
                pl.BlockSpec((bt, 1), lambda i: (i, 0)),            # trg token ids
                pl.BlockSpec((bt, E), lambda i: (i, 0)),            # previous hidden
                pl.BlockSpec((bt, S, 2 * E), lambda i: (i, 0, 0)),  # contexts
                pl.BlockSpec((bt, S), lambda i: (i, 0)),            # additive pad-mask bias
                bcast2((n_class, E)),                               # embedding table
                bcast2((E, 2 * E)),                                 # attn W
                bcast2((2 * E, E)),                                 # attn W^T
                bcast2((1, E)),                                     # attn bias
                bcast3((3, E, E)),                                  # GRU W_ih (emb part), per gate, transposed
                bcast3((3, E, E)),                                  # GRU W_ih (weighted part)
                bcast3((3, E, E)),                                  # GRU W_hh, per gate, transposed
                bcast3((3, 1, E)),                                  # GRU b_ih per gate
                bcast3((3, 1, E)),                                  # GRU b_hh per gate
                bcast2((E, n_class)),                               # out W^T
                bcast2((1, n_class)),                               # out bias
            ],
            out_specs=[
                pl.BlockSpec((bt, n_class), lambda i: (i, 0)),      # logits
                pl.BlockSpec((bt, E), lambda i: (i, 0)),            # new hidden
            ],
        ),
        compiler_params=pltpu.CompilerParams(
            dimension_semantics=("parallel",),
            vmem_limit_bytes=32 * 1024 * 1024,
        ),
    )(ids2, h2, ctx, mask_bias, params["emb"], attn_w, attn_wt, attn_b,
      wxe, wxw, wh, bx, bh, out_wt, out_b)

    return logits[:B], h_new[:B].reshape(B, 1, E)


def decoder_gru_reference(trg_input, hidden, contexts, src_input, params, padding_idx):
    """Pure-JAX mirror of the PyTorch DecoderGRU.forward (with the repo attention)."""
    contexts = contexts.astype(jnp.float32)
    emb = jnp.take(params["emb"], trg_input, axis=0)                   # (B, E)
    w, b = params["attn_w"], params["attn_b"]
    proj = jnp.einsum("bsf,ef->bse", contexts, w) + b[None, None, :]   # (B, S, E)
    energy = jnp.einsum("bqe,bse->bqs", hidden, proj)                  # (B, 1, S)
    mask = (src_input == padding_idx)[:, None, :]
    energy = jnp.where(mask, -jnp.inf, energy)
    attn = jax.nn.softmax(energy, axis=-1)
    weighted = jnp.einsum("bqs,bse->bqe", attn, proj)                  # (B, 1, E)

    x = jnp.concatenate([emb, weighted[:, 0, :]], axis=-1)             # (B, 2E)
    h = hidden[:, 0, :]
    E = h.shape[-1]
    gx = x @ params["gru_wih"].T + params["gru_bih"]
    gh = h @ params["gru_whh"].T + params["gru_bhh"]
    r = jax.nn.sigmoid(gx[:, :E] + gh[:, :E])
    z = jax.nn.sigmoid(gx[:, E:2 * E] + gh[:, E:2 * E])
    n = jnp.tanh(gx[:, 2 * E:] + r * gh[:, 2 * E:])
    h_new = (1.0 - z) * n + z * h
    logits = h_new @ params["out_w"].T + params["out_b"]
    return logits, h_new[:, None, :]


if __name__ == "__main__":
    B, S, E, N_CLASS = 2, 8, 32, 16
    PADDING_IDX = 0

    key = jax.random.PRNGKey(0)
    ks = jax.random.split(key, 12)

    hidden = jax.random.normal(ks[0], (B, 1, E), dtype=jnp.float32)
    contexts = jax.random.normal(ks[1], (B, S, 2 * E), dtype=jnp.float32)
    src_input = jax.random.randint(ks[2], (B, S), 1, N_CLASS, dtype=jnp.int32)
    src_input = src_input.at[:, S - 2:].set(PADDING_IDX)   # trailing pad, never a full row
    trg_input = jax.random.randint(ks[3], (B,), 0, N_CLASS, dtype=jnp.int32)

    def uniform(k, shape, fan_in):
        bound = 1.0 / float(fan_in) ** 0.5
        return jax.random.uniform(k, shape, jnp.float32, -bound, bound)

    params = {
        "emb": jax.random.normal(ks[4], (N_CLASS, E), dtype=jnp.float32),
        "attn_w": uniform(ks[5], (E, 2 * E), 2 * E),      # attention linear_out (E, 2E)
        "attn_b": uniform(ks[6], (E,), 2 * E),
        "gru_wih": uniform(ks[7], (3 * E, 2 * E), E),     # nn.GRU weight_ih_l0
        "gru_whh": uniform(ks[8], (3 * E, E), E),         # nn.GRU weight_hh_l0
        "gru_bih": uniform(ks[9], (3 * E,), E),
        "gru_bhh": uniform(ks[10], (3 * E,), E),
        "out_w": uniform(ks[11], (N_CLASS, E), E),        # nn.Linear(E, n_class)
        "out_b": jnp.zeros((N_CLASS,), jnp.float32),
    }

    logits, h_new = decoder_gru_forward(trg_input, hidden, contexts, src_input,
                                        params, PADDING_IDX)
    jax.block_until_ready((logits, h_new))

    logits_ref, h_ref = decoder_gru_reference(trg_input, hidden, contexts,
                                              src_input, params, PADDING_IDX)

    assert logits.shape == (B, N_CLASS) and h_new.shape == (B, 1, E)
    # tolerance covers the EUP approx reciprocal in the softmax and the
    # reassociated (proj-free) attention math.
    assert jnp.allclose(logits, logits_ref, atol=2e-3, rtol=2e-3)
    assert jnp.allclose(h_new, h_ref, atol=2e-3, rtol=2e-3)

    # bf16 contexts path (halves HBM traffic for the dominant input on v6e/v7x).
    logits_bf, h_bf = decoder_gru_forward(trg_input, hidden,
                                          contexts.astype(jnp.bfloat16),
                                          src_input, params, PADDING_IDX)
    jax.block_until_ready((logits_bf, h_bf))
    assert jnp.allclose(logits_bf, logits_ref, atol=5e-2, rtol=5e-2)
    assert jnp.allclose(h_bf, h_ref, atol=5e-2, rtol=5e-2)

    print("KERNEL_OK")
</pallas_src>

<mosaic_0001>
module attributes {stable_mosaic.version = 11 : i64} {
  func.func @decoder_step_kernel(%arg0: i32, %arg1: memref<8x1xi32, #tpu.memory_space<vmem>>, %arg2: memref<8x32xf32, #tpu.memory_space<vmem>>, %arg3: memref<8x8x64xf32, #tpu.memory_space<vmem>>, %arg4: memref<8x8xf32, #tpu.memory_space<vmem>>, %arg5: memref<16x32xf32, #tpu.memory_space<vmem>>, %arg6: memref<32x64xf32, #tpu.memory_space<vmem>>, %arg7: memref<64x32xf32, #tpu.memory_space<vmem>>, %arg8: memref<1x32xf32, #tpu.memory_space<vmem>>, %arg9: memref<3x32x32xf32, #tpu.memory_space<vmem>>, %arg10: memref<3x32x32xf32, #tpu.memory_space<vmem>>, %arg11: memref<3x32x32xf32, #tpu.memory_space<vmem>>, %arg12: memref<3x1x32xf32, #tpu.memory_space<vmem>>, %arg13: memref<3x1x32xf32, #tpu.memory_space<vmem>>, %arg14: memref<32x16xf32, #tpu.memory_space<vmem>>, %arg15: memref<1x16xf32, #tpu.memory_space<vmem>>, %arg16: memref<8x16xf32, #tpu.memory_space<vmem>>, %arg17: memref<8x32xf32, #tpu.memory_space<vmem>>) attributes {dimension_semantics = [#tpu.dimension_semantics<parallel>], iteration_bounds = array<i64: 1>, scalar_prefetch = 0 : i64, scratch_operands = 0 : i64, tpu.core_type = #tpu.core_type<tc>, window_params = [{transform_indices = @transform_0, window_bounds = array<i64: 8, 1>}, {transform_indices = @transform_1, window_bounds = array<i64: 8, 32>}, {transform_indices = @transform_2, window_bounds = array<i64: 8, 8, 64>}, {transform_indices = @transform_3, window_bounds = array<i64: 8, 8>}, {pipeline_mode = #tpu.pipeline_mode<synchronous>, transform_indices = @transform_4, window_bounds = array<i64: 16, 32>}, {pipeline_mode = #tpu.pipeline_mode<synchronous>, transform_indices = @transform_5, window_bounds = array<i64: 32, 64>}, {pipeline_mode = #tpu.pipeline_mode<synchronous>, transform_indices = @transform_6, window_bounds = array<i64: 64, 32>}, {pipeline_mode = #tpu.pipeline_mode<synchronous>, transform_indices = @transform_7, window_bounds = array<i64: 1, 32>}, {pipeline_mode = #tpu.pipeline_mode<synchronous>, transform_indices = @transform_8, window_bounds = array<i64: 3, 32, 32>}, {pipeline_mode = #tpu.pipeline_mode<synchronous>, transform_indices = @transform_9, window_bounds = array<i64: 3, 32, 32>}, {pipeline_mode = #tpu.pipeline_mode<synchronous>, transform_indices = @transform_10, window_bounds = array<i64: 3, 32, 32>}, {pipeline_mode = #tpu.pipeline_mode<synchronous>, transform_indices = @transform_11, window_bounds = array<i64: 3, 1, 32>}, {pipeline_mode = #tpu.pipeline_mode<synchronous>, transform_indices = @transform_12, window_bounds = array<i64: 3, 1, 32>}, {pipeline_mode = #tpu.pipeline_mode<synchronous>, transform_indices = @transform_13, window_bounds = array<i64: 32, 16>}, {pipeline_mode = #tpu.pipeline_mode<synchronous>, transform_indices = @transform_14, window_bounds = array<i64: 1, 16>}, {transform_indices = @transform_15, window_bounds = array<i64: 8, 16>}, {transform_indices = @transform_16, window_bounds = array<i64: 8, 32>}]} {
    %c0 = arith.constant 0 : index
    %c0_0 = arith.constant 0 : index
    %0 = vector.load %arg2[%c0, %c0_0] : memref<8x32xf32, #tpu.memory_space<vmem>>, vector<8x32xf32>
    %c0_1 = arith.constant 0 : index
    %c0_2 = arith.constant 0 : index
    %c0_3 = arith.constant 0 : index
    %1 = vector.load %arg3[%c0_1, %c0_2, %c0_3] : memref<8x8x64xf32, #tpu.memory_space<vmem>>, vector<8x8x64xf32>
    %c0_4 = arith.constant 0 : index
    %c0_5 = arith.constant 0 : index
    %2 = vector.load %arg4[%c0_4, %c0_5] : memref<8x8xf32, #tpu.memory_space<vmem>>, vector<8x8xf32>
    %c0_6 = arith.constant 0 : index
    %c0_7 = arith.constant 0 : index
    %3 = vector.load %arg1[%c0_6, %c0_7] : memref<8x1xi32, #tpu.memory_space<vmem>>, vector<8x1xi32>
    %4 = tpu.iota {dimensions = array<i32: 1>} : vector<8x16xi32>
    %5 = vector.broadcast %3 : vector<8x1xi32> to vector<8x16xi32>
    %6 = arith.cmpi eq, %4, %5 : vector<8x16xi32>
    %7 = arith.extui %6 : vector<8x16xi1> to vector<8x16xi32>
    %8 = arith.sitofp %7 : vector<8x16xi32> to vector<8x16xf32>
    %c0_8 = arith.constant 0 : index
    %c0_9 = arith.constant 0 : index
    %9 = vector.load %arg5[%c0_8, %c0_9] : memref<16x32xf32, #tpu.memory_space<vmem>>, vector<16x32xf32>
    %cst = arith.constant dense<0.000000e+00> : vector<8x32xf32>
    %10 = tpu.matmul %8, %9, %cst {dimension_numbers = #tpu.dot_dimension_numbers<[1], [0], [0], [1], [0, 0, 1, 1], [], []>} : vector<8x16xf32>, vector<16x32xf32>, vector<8x32xf32> -> vector<8x32xf32>
    %c0_10 = arith.constant 0 : index
    %c0_11 = arith.constant 0 : index
    %11 = vector.load %arg6[%c0_10, %c0_11] : memref<32x64xf32, #tpu.memory_space<vmem>>, vector<32x64xf32>
    %c0_12 = arith.constant 0 : index
    %c0_13 = arith.constant 0 : index
    %12 = vector.load %arg7[%c0_12, %c0_13] : memref<64x32xf32, #tpu.memory_space<vmem>>, vector<64x32xf32>
    %c0_14 = arith.constant 0 : index
    %c0_15 = arith.constant 0 : index
    %13 = vector.load %arg8[%c0_14, %c0_15] : memref<1x32xf32, #tpu.memory_space<vmem>>, vector<1x32xf32>
    %cst_16 = arith.constant dense<0.000000e+00> : vector<8x64xf32>
    %14 = tpu.matmul %0, %11, %cst_16 {dimension_numbers = #tpu.dot_dimension_numbers<[1], [0], [0], [1], [0, 0, 1, 1], [], []>} : vector<8x32xf32>, vector<32x64xf32>, vector<8x64xf32> -> vector<8x64xf32>
    %15 = vector.broadcast %13 : vector<1x32xf32> to vector<8x32xf32>
    %16 = arith.mulf %0, %15 : vector<8x32xf32>
    %cst_17 = arith.constant dense<0.000000e+00> : vector<8xf32>
    %17 = vector.multi_reduction <add>, %16, %cst_17 [1] : vector<8x32xf32> to vector<8xf32>
    %18 = vector.shape_cast %17 : vector<8xf32> to vector<8x1xf32>
    %19 = vector.shape_cast %14 : vector<8x64xf32> to vector<8x1x64xf32>
    %20 = vector.broadcast %19 : vector<8x1x64xf32> to vector<8x8x64xf32>
    %21 = arith.mulf %20, %1 : vector<8x8x64xf32>
    %cst_18 = arith.constant dense<0.000000e+00> : vector<8x8xf32>
    %22 = vector.multi_reduction <add>, %21, %cst_18 [2] : vector<8x8x64xf32> to vector<8x8xf32>
    %23 = vector.broadcast %18 : vector<8x1xf32> to vector<8x8xf32>
    %24 = arith.addf %22, %23 : vector<8x8xf32>
    %25 = arith.addf %24, %2 : vector<8x8xf32>
    %cst_19 = arith.constant dense<0xFF800000> : vector<8xf32>
    %26 = vector.multi_reduction <maximumf>, %25, %cst_19 [1] : vector<8x8xf32> to vector<8xf32>
    %27 = vector.shape_cast %26 : vector<8xf32> to vector<8x1xf32>
    %28 = vector.broadcast %27 : vector<8x1xf32> to vector<8x8xf32>
    %29 = arith.subf %25, %28 : vector<8x8xf32>
    %30 = math.exp %29 : vector<8x8xf32>
    %cst_20 = arith.constant dense<0.000000e+00> : vector<8xf32>
    %31 = vector.multi_reduction <add>, %30, %cst_20 [1] : vector<8x8xf32> to vector<8xf32>
    %32 = vector.shape_cast %31 : vector<8xf32> to vector<8x1xf32>
    %33 = tpu.reciprocal %32 {approx = true} : vector<8x1xf32> -> vector<8x1xf32>
    %34 = vector.broadcast %33 : vector<8x1xf32> to vector<8x8xf32>
    %35 = arith.mulf %30, %34 : vector<8x8xf32>
    %36 = vector.shape_cast %35 : vector<8x8xf32> to vector<8x8x1xf32>
    %37 = vector.broadcast %36 : vector<8x8x1xf32> to vector<8x8x64xf32>
    %38 = arith.mulf %37, %1 : vector<8x8x64xf32>
    %cst_21 = arith.constant dense<0.000000e+00> : vector<8x64xf32>
    %39 = vector.multi_reduction <add>, %38, %cst_21 [1] : vector<8x8x64xf32> to vector<8x64xf32>
    %cst_22 = arith.constant dense<0.000000e+00> : vector<8x32xf32>
    %40 = tpu.matmul %39, %12, %cst_22 {dimension_numbers = #tpu.dot_dimension_numbers<[1], [0], [0], [1], [0, 0, 1, 1], [], []>} : vector<8x64xf32>, vector<64x32xf32>, vector<8x32xf32> -> vector<8x32xf32>
    %41 = vector.broadcast %13 : vector<1x32xf32> to vector<8x32xf32>
    %42 = arith.addf %40, %41 : vector<8x32xf32>
    %c0_23 = arith.constant 0 : index
    %c0_24 = arith.constant 0 : index
    %c0_25 = arith.constant 0 : index
    %43 = vector.load %arg9[%c0_23, %c0_24, %c0_25] : memref<3x32x32xf32, #tpu.memory_space<vmem>>, vector<1x32x32xf32>
    %44 = vector.shape_cast %43 : vector<1x32x32xf32> to vector<32x32xf32>
    %cst_26 = arith.constant dense<0.000000e+00> : vector<8x32xf32>
    %45 = tpu.matmul %10, %44, %cst_26 {dimension_numbers = #tpu.dot_dimension_numbers<[1], [0], [0], [1], [0, 0, 1, 1], [], []>} : vector<8x32xf32>, vector<32x32xf32>, vector<8x32xf32> -> vector<8x32xf32>
    %c0_27 = arith.constant 0 : index
    %c0_28 = arith.constant 0 : index
    %c0_29 = arith.constant 0 : index
    %46 = vector.load %arg10[%c0_27, %c0_28, %c0_29] : memref<3x32x32xf32, #tpu.memory_space<vmem>>, vector<1x32x32xf32>
    %47 = vector.shape_cast %46 : vector<1x32x32xf32> to vector<32x32xf32>
    %cst_30 = arith.constant dense<0.000000e+00> : vector<8x32xf32>
    %48 = tpu.matmul %42, %47, %cst_30 {dimension_numbers = #tpu.dot_dimension_numbers<[1], [0], [0], [1], [0, 0, 1, 1], [], []>} : vector<8x32xf32>, vector<32x32xf32>, vector<8x32xf32> -> vector<8x32xf32>
    %49 = arith.addf %45, %48 : vector<8x32xf32>
    %c0_31 = arith.constant 0 : index
    %c0_32 = arith.constant 0 : index
    %c0_33 = arith.constant 0 : index
    %50 = vector.load %arg12[%c0_31, %c0_32, %c0_33] : memref<3x1x32xf32, #tpu.memory_space<vmem>>, vector<1x1x32xf32>
    %51 = vector.shape_cast %50 : vector<1x1x32xf32> to vector<1x32xf32>
    %52 = vector.broadcast %51 : vector<1x32xf32> to vector<8x32xf32>
    %53 = arith.addf %49, %52 : vector<8x32xf32>
    %c0_34 = arith.constant 0 : index
    %c0_35 = arith.constant 0 : index
    %c0_36 = arith.constant 0 : index
    %54 = vector.load %arg11[%c0_34, %c0_35, %c0_36] : memref<3x32x32xf32, #tpu.memory_space<vmem>>, vector<1x32x32xf32>
    %55 = vector.shape_cast %54 : vector<1x32x32xf32> to vector<32x32xf32>
    %cst_37 = arith.constant dense<0.000000e+00> : vector<8x32xf32>
    %56 = tpu.matmul %0, %55, %cst_37 {dimension_numbers = #tpu.dot_dimension_numbers<[1], [0], [0], [1], [0, 0, 1, 1], [], []>} : vector<8x32xf32>, vector<32x32xf32>, vector<8x32xf32> -> vector<8x32xf32>
    %c0_38 = arith.constant 0 : index
    %c0_39 = arith.constant 0 : index
    %c0_40 = arith.constant 0 : index
    %57 = vector.load %arg13[%c0_38, %c0_39, %c0_40] : memref<3x1x32xf32, #tpu.memory_space<vmem>>, vector<1x1x32xf32>
    %58 = vector.shape_cast %57 : vector<1x1x32xf32> to vector<1x32xf32>
    %59 = vector.broadcast %58 : vector<1x32xf32> to vector<8x32xf32>
    %60 = arith.addf %56, %59 : vector<8x32xf32>
    %c1 = arith.constant 1 : index
    %c0_41 = arith.constant 0 : index
    %c0_42 = arith.constant 0 : index
    %61 = vector.load %arg9[%c1, %c0_41, %c0_42] : memref<3x32x32xf32, #tpu.memory_space<vmem>>, vector<1x32x32xf32>
    %62 = vector.shape_cast %61 : vector<1x32x32xf32> to vector<32x32xf32>
    %cst_43 = arith.constant dense<0.000000e+00> : vector<8x32xf32>
    %63 = tpu.matmul %10, %62, %cst_43 {dimension_numbers = #tpu.dot_dimension_numbers<[1], [0], [0], [1], [0, 0, 1, 1], [], []>} : vector<8x32xf32>, vector<32x32xf32>, vector<8x32xf32> -> vector<8x32xf32>
    %c1_44 = arith.constant 1 : index
    %c0_45 = arith.constant 0 : index
    %c0_46 = arith.constant 0 : index
    %64 = vector.load %arg10[%c1_44, %c0_45, %c0_46] : memref<3x32x32xf32, #tpu.memory_space<vmem>>, vector<1x32x32xf32>
    %65 = vector.shape_cast %64 : vector<1x32x32xf32> to vector<32x32xf32>
    %cst_47 = arith.constant dense<0.000000e+00> : vector<8x32xf32>
    %66 = tpu.matmul %42, %65, %cst_47 {dimension_numbers = #tpu.dot_dimension_numbers<[1], [0], [0], [1], [0, 0, 1, 1], [], []>} : vector<8x32xf32>, vector<32x32xf32>, vector<8x32xf32> -> vector<8x32xf32>
    %67 = arith.addf %63, %66 : vector<8x32xf32>
    %c1_48 = arith.constant 1 : index
    %c0_49 = arith.constant 0 : index
    %c0_50 = arith.constant 0 : index
    %68 = vector.load %arg12[%c1_48, %c0_49, %c0_50] : memref<3x1x32xf32, #tpu.memory_space<vmem>>, vector<1x1x32xf32>
    %69 = vector.shape_cast %68 : vector<1x1x32xf32> to vector<1x32xf32>
    %70 = vector.broadcast %69 : vector<1x32xf32> to vector<8x32xf32>
    %71 = arith.addf %67, %70 : vector<8x32xf32>
    %c1_51 = arith.constant 1 : index
    %c0_52 = arith.constant 0 : index
    %c0_53 = arith.constant 0 : index
    %72 = vector.load %arg11[%c1_51, %c0_52, %c0_53] : memref<3x32x32xf32, #tpu.memory_space<vmem>>, vector<1x32x32xf32>
    %73 = vector.shape_cast %72 : vector<1x32x32xf32> to vector<32x32xf32>
    %cst_54 = arith.constant dense<0.000000e+00> : vector<8x32xf32>
    %74 = tpu.matmul %0, %73, %cst_54 {dimension_numbers = #tpu.dot_dimension_numbers<[1], [0], [0], [1], [0, 0, 1, 1], [], []>} : vector<8x32xf32>, vector<32x32xf32>, vector<8x32xf32> -> vector<8x32xf32>
    %c1_55 = arith.constant 1 : index
    %c0_56 = arith.constant 0 : index
    %c0_57 = arith.constant 0 : index
    %75 = vector.load %arg13[%c1_55, %c0_56, %c0_57] : memref<3x1x32xf32, #tpu.memory_space<vmem>>, vector<1x1x32xf32>
    %76 = vector.shape_cast %75 : vector<1x1x32xf32> to vector<1x32xf32>
    %77 = vector.broadcast %76 : vector<1x32xf32> to vector<8x32xf32>
    %78 = arith.addf %74, %77 : vector<8x32xf32>
    %c2 = arith.constant 2 : index
    %c0_58 = arith.constant 0 : index
    %c0_59 = arith.constant 0 : index
    %79 = vector.load %arg9[%c2, %c0_58, %c0_59] : memref<3x32x32xf32, #tpu.memory_space<vmem>>, vector<1x32x32xf32>
    %80 = vector.shape_cast %79 : vector<1x32x32xf32> to vector<32x32xf32>
    %cst_60 = arith.constant dense<0.000000e+00> : vector<8x32xf32>
    %81 = tpu.matmul %10, %80, %cst_60 {dimension_numbers = #tpu.dot_dimension_numbers<[1], [0], [0], [1], [0, 0, 1, 1], [], []>} : vector<8x32xf32>, vector<32x32xf32>, vector<8x32xf32> -> vector<8x32xf32>
    %c2_61 = arith.constant 2 : index
    %c0_62 = arith.constant 0 : index
    %c0_63 = arith.constant 0 : index
    %82 = vector.load %arg10[%c2_61, %c0_62, %c0_63] : memref<3x32x32xf32, #tpu.memory_space<vmem>>, vector<1x32x32xf32>
    %83 = vector.shape_cast %82 : vector<1x32x32xf32> to vector<32x32xf32>
    %cst_64 = arith.constant dense<0.000000e+00> : vector<8x32xf32>
    %84 = tpu.matmul %42, %83, %cst_64 {dimension_numbers = #tpu.dot_dimension_numbers<[1], [0], [0], [1], [0, 0, 1, 1], [], []>} : vector<8x32xf32>, vector<32x32xf32>, vector<8x32xf32> -> vector<8x32xf32>
    %85 = arith.addf %81, %84 : vector<8x32xf32>
    %c2_65 = arith.constant 2 : index
    %c0_66 = arith.constant 0 : index
    %c0_67 = arith.constant 0 : index
    %86 = vector.load %arg12[%c2_65, %c0_66, %c0_67] : memref<3x1x32xf32, #tpu.memory_space<vmem>>, vector<1x1x32xf32>
    %87 = vector.shape_cast %86 : vector<1x1x32xf32> to vector<1x32xf32>
    %88 = vector.broadcast %87 : vector<1x32xf32> to vector<8x32xf32>
    %89 = arith.addf %85, %88 : vector<8x32xf32>
    %c2_68 = arith.constant 2 : index
    %c0_69 = arith.constant 0 : index
    %c0_70 = arith.constant 0 : index
    %90 = vector.load %arg11[%c2_68, %c0_69, %c0_70] : memref<3x32x32xf32, #tpu.memory_space<vmem>>, vector<1x32x32xf32>
    %91 = vector.shape_cast %90 : vector<1x32x32xf32> to vector<32x32xf32>
    %cst_71 = arith.constant dense<0.000000e+00> : vector<8x32xf32>
    %92 = tpu.matmul %0, %91, %cst_71 {dimension_numbers = #tpu.dot_dimension_numbers<[1], [0], [0], [1], [0, 0, 1, 1], [], []>} : vector<8x32xf32>, vector<32x32xf32>, vector<8x32xf32> -> vector<8x32xf32>
    %c2_72 = arith.constant 2 : index
    %c0_73 = arith.constant 0 : index
    %c0_74 = arith.constant 0 : index
    %93 = vector.load %arg13[%c2_72, %c0_73, %c0_74] : memref<3x1x32xf32, #tpu.memory_space<vmem>>, vector<1x1x32xf32>
    %94 = vector.shape_cast %93 : vector<1x1x32xf32> to vector<1x32xf32>
    %95 = vector.broadcast %94 : vector<1x32xf32> to vector<8x32xf32>
    %96 = arith.addf %92, %95 : vector<8x32xf32>
    %97 = arith.addf %53, %60 : vector<8x32xf32>
    %cst_75 = arith.constant 0.000000e+00 : f32
    %98 = vector.broadcast %cst_75 : f32 to vector<8x32xf32>
    %99 = arith.subf %98, %97 : vector<8x32xf32>
    %100 = math.exp %99 : vector<8x32xf32>
    %cst_76 = arith.constant 1.000000e+00 : f32
    %101 = vector.broadcast %cst_76 : f32 to vector<8x32xf32>
    %102 = arith.addf %101, %100 : vector<8x32xf32>
    %cst_77 = arith.constant 1.000000e+00 : f32
    %103 = vector.broadcast %cst_77 : f32 to vector<8x32xf32>
    %104 = arith.divf %103, %102 : vector<8x32xf32>
    %105 = arith.addf %71, %78 : vector<8x32xf32>
    %cst_78 = arith.constant 0.000000e+00 : f32
    %106 = vector.broadcast %cst_78 : f32 to vector<8x32xf32>
    %107 = arith.subf %106, %105 : vector<8x32xf32>
    %108 = math.exp %107 : vector<8x32xf32>
    %cst_79 = arith.constant 1.000000e+00 : f32
    %109 = vector.broadcast %cst_79 : f32 to vector<8x32xf32>
    %110 = arith.addf %109, %108 : vector<8x32xf32>
    %cst_80 = arith.constant 1.000000e+00 : f32
    %111 = vector.broadcast %cst_80 : f32 to vector<8x32xf32>
    %112 = arith.divf %111, %110 : vector<8x32xf32>
    %113 = arith.mulf %104, %96 : vector<8x32xf32>
    %114 = arith.addf %89, %113 : vector<8x32xf32>
    %115 = math.tanh %114 : vector<8x32xf32>
    %cst_81 = arith.constant 1.000000e+00 : f32
    %116 = vector.broadcast %cst_81 : f32 to vector<8x32xf32>
    %117 = arith.subf %116, %112 : vector<8x32xf32>
    %118 = arith.mulf %117, %115 : vector<8x32xf32>
    %119 = arith.mulf %112, %0 : vector<8x32xf32>
    %120 = arith.addf %118, %119 : vector<8x32xf32>
    %c0_82 = arith.constant 0 : index
    %c0_83 = arith.constant 0 : index
    %121 = vector.load %arg14[%c0_82, %c0_83] : memref<32x16xf32, #tpu.memory_space<vmem>>, vector<32x16xf32>
    %cst_84 = arith.constant dense<0.000000e+00> : vector<8x16xf32>
    %122 = tpu.matmul %120, %121, %cst_84 {dimension_numbers = #tpu.dot_dimension_numbers<[1], [0], [0], [1], [0, 0, 1, 1], [], []>} : vector<8x32xf32>, vector<32x16xf32>, vector<8x16xf32> -> vector<8x16xf32>
    %c0_85 = arith.constant 0 : index
    %c0_86 = arith.constant 0 : index
    %123 = vector.load %arg15[%c0_85, %c0_86] : memref<1x16xf32, #tpu.memory_space<vmem>>, vector<1x16xf32>
    %124 = vector.broadcast %123 : vector<1x16xf32> to vector<8x16xf32>
    %125 = arith.addf %122, %124 : vector<8x16xf32>
    %c0_87 = arith.constant 0 : index
    %c0_88 = arith.constant 0 : index
    %126 = vector.load %arg16[%c0_87, %c0_88] : memref<8x16xf32, #tpu.memory_space<vmem>>, vector<8x16xf32>
    tpu.vector_store %arg16[%c0_87, %c0_88], %125 {strides = array<i32>} : memref<8x16xf32, #tpu.memory_space<vmem>>, vector<8x16xf32>,
    %c0_89 = arith.constant 0 : index
    %c0_90 = arith.constant 0 : index
    %127 = vector.load %arg17[%c0_89, %c0_90] : memref<8x32xf32, #tpu.memory_space<vmem>>, vector<8x32xf32>
    tpu.vector_store %arg17[%c0_89, %c0_90], %120 {strides = array<i32>} : memref<8x32xf32, #tpu.memory_space<vmem>>, vector<8x32xf32>,
    return
  }
  func.func @transform_0(%arg0: i32) -> (i32, i32) {
    %c0_i32 = arith.constant 0 : i32
    %c0_i32_0 = arith.constant 0 : i32
    return %arg0, %c0_i32 : i32, i32
  }
  func.func @transform_1(%arg0: i32) -> (i32, i32) {
    %c0_i32 = arith.constant 0 : i32
    %c0_i32_0 = arith.constant 0 : i32
    return %arg0, %c0_i32 : i32, i32
  }
  func.func @transform_2(%arg0: i32) -> (i32, i32, i32) {
    %c0_i32 = arith.constant 0 : i32
    %c0_i32_0 = arith.constant 0 : i32
    %c0_i32_1 = arith.constant 0 : i32
    return %arg0, %c0_i32, %c0_i32_0 : i32, i32, i32
  }
  func.func @transform_3(%arg0: i32) -> (i32, i32) {
    %c0_i32 = arith.constant 0 : i32
    %c0_i32_0 = arith.constant 0 : i32
    return %arg0, %c0_i32 : i32, i32
  }
  func.func @transform_4(%arg0: i32) -> (i32, i32) {
    %c0_i32 = arith.constant 0 : i32
    %c0_i32_0 = arith.constant 0 : i32
    %c0_i32_1 = arith.constant 0 : i32
    return %c0_i32, %c0_i32_0 : i32, i32
  }
  func.func @transform_5(%arg0: i32) -> (i32, i32) {
    %c0_i32 = arith.constant 0 : i32
    %c0_i32_0 = arith.constant 0 : i32
    %c0_i32_1 = arith.constant 0 : i32
    return %c0_i32, %c0_i32_0 : i32, i32
  }
  func.func @transform_6(%arg0: i32) -> (i32, i32) {
    %c0_i32 = arith.constant 0 : i32
    %c0_i32_0 = arith.constant 0 : i32
    %c0_i32_1 = arith.constant 0 : i32
    return %c0_i32, %c0_i32_0 : i32, i32
  }
  func.func @transform_7(%arg0: i32) -> (i32, i32) {
    %c0_i32 = arith.constant 0 : i32
    %c0_i32_0 = arith.constant 0 : i32
    %c0_i32_1 = arith.constant 0 : i32
    return %c0_i32, %c0_i32_0 : i32, i32
  }
  func.func @transform_8(%arg0: i32) -> (i32, i32, i32) {
    %c0_i32 = arith.constant 0 : i32
    %c0_i32_0 = arith.constant 0 : i32
    %c0_i32_1 = arith.constant 0 : i32
    %c0_i32_2 = arith.constant 0 : i32
    return %c0_i32, %c0_i32_0, %c0_i32_1 : i32, i32, i32
  }
  func.func @transform_9(%arg0: i32) -> (i32, i32, i32) {
    %c0_i32 = arith.constant 0 : i32
    %c0_i32_0 = arith.constant 0 : i32
    %c0_i32_1 = arith.constant 0 : i32
    %c0_i32_2 = arith.constant 0 : i32
    return %c0_i32, %c0_i32_0, %c0_i32_1 : i32, i32, i32
  }
  func.func @transform_10(%arg0: i32) -> (i32, i32, i32) {
    %c0_i32 = arith.constant 0 : i32
    %c0_i32_0 = arith.constant 0 : i32
    %c0_i32_1 = arith.constant 0 : i32
    %c0_i32_2 = arith.constant 0 : i32
    return %c0_i32, %c0_i32_0, %c0_i32_1 : i32, i32, i32
  }
  func.func @transform_11(%arg0: i32) -> (i32, i32, i32) {
    %c0_i32 = arith.constant 0 : i32
    %c0_i32_0 = arith.constant 0 : i32
    %c0_i32_1 = arith.constant 0 : i32
    %c0_i32_2 = arith.constant 0 : i32
    return %c0_i32, %c0_i32_0, %c0_i32_1 : i32, i32, i32
  }
  func.func @transform_12(%arg0: i32) -> (i32, i32, i32) {
    %c0_i32 = arith.constant 0 : i32
    %c0_i32_0 = arith.constant 0 : i32
    %c0_i32_1 = arith.constant 0 : i32
    %c0_i32_2 = arith.constant 0 : i32
    return %c0_i32, %c0_i32_0, %c0_i32_1 : i32, i32, i32
  }
  func.func @transform_13(%arg0: i32) -> (i32, i32) {
    %c0_i32 = arith.constant 0 : i32
    %c0_i32_0 = arith.constant 0 : i32
    %c0_i32_1 = arith.constant 0 : i32
    return %c0_i32, %c0_i32_0 : i32, i32
  }
  func.func @transform_14(%arg0: i32) -> (i32, i32) {
    %c0_i32 = arith.constant 0 : i32
    %c0_i32_0 = arith.constant 0 : i32
    %c0_i32_1 = arith.constant 0 : i32
    return %c0_i32, %c0_i32_0 : i32, i32
  }
  func.func @transform_15(%arg0: i32) -> (i32, i32) {
    %c0_i32 = arith.constant 0 : i32
    %c0_i32_0 = arith.constant 0 : i32
    return %arg0, %c0_i32 : i32, i32
  }
  func.func @transform_16(%arg0: i32) -> (i32, i32) {
    %c0_i32 = arith.constant 0 : i32
    %c0_i32_0 = arith.constant 0 : i32
    return %arg0, %c0_i32 : i32, i32
  }
}

</mosaic_0001>

<llo_original>
// kernel: tpu_custom_call.1
$region0: #{tpu_custom_call.1}
  #allocation0 [shape = 'u32[]', space=smem, size = 0x4, offset = 0x4, fixed_abs, tag = 'smem constant byte address 0x4 - core index']
  #allocation1 [shape = 'u32[72,128]{1,0:T(1,128)}', space=vmem, size = 0x9000, scoped, tag = 'internal scratch']
  %s0 = inlined_call_operand.vmem [shape: s32[8,1], index: 0, kind: input, shape index: {}]
  %s1 = inlined_call_operand.hbm [shape: f32[8,32], index: 1, kind: input, shape index: {}]
  %s2 = inlined_call_operand.hbm [shape: f32[8,8,64], index: 2, kind: input, shape index: {}]
  %s3 = inlined_call_operand.hbm [shape: f32[8,8], index: 3, kind: input, shape index: {}]
  %s4 = inlined_call_operand.vmem [shape: f32[16,32], index: 4, kind: input, shape index: {}]
  %s5 = inlined_call_operand.hbm [shape: f32[32,64], index: 5, kind: input, shape index: {}]
  %s6 = inlined_call_operand.vmem [shape: f32[64,32], index: 6, kind: input, shape index: {}]
  %s7 = inlined_call_operand.vmem [shape: f32[1,32], index: 7, kind: input, shape index: {}]
  %s8 = inlined_call_operand.vmem [shape: f32[3,32,32], index: 8, kind: input, shape index: {}]
  %s9 = inlined_call_operand.hbm [shape: f32[3,32,32], index: 9, kind: input, shape index: {}]
  %s10 = inlined_call_operand.hbm [shape: f32[3,32,32], index: 10, kind: input, shape index: {}]
  %s11 = inlined_call_operand.vmem [shape: f32[3,1,32], index: 11, kind: input, shape index: {}]
  %s12 = inlined_call_operand.hbm [shape: f32[3,1,32], index: 12, kind: input, shape index: {}]
  %s13 = inlined_call_operand.vmem [shape: f32[32,16], index: 13, kind: input, shape index: {}]
  %s14 = inlined_call_operand.vmem [shape: f32[1,16], index: 14, kind: input, shape index: {}]
  %s15 = inlined_call_operand.hbm [shape: f32[8,16], index: 15, kind: output, shape index: {0}]
  %s16 = inlined_call_operand.hbm [shape: f32[8,32], index: 16, kind: output, shape index: {1}]
  %17 = xla_tuple %s15, %s16
  %s18 = sld [smem:[#allocation0]]
  $region106: #{tpu_custom_call.1} parent=0
    _
  %s20 = ssub.s32 1, %s18
  %s21 = scalar_select 0, %s20, %s18
  $region1: #{tpu_custom_call.1} parent=0
    #allocation2 [shape = 'u8[4096]{0}', space=vmem, size = 0x1000, scoped, tag = 'input window, operand 1, single buffered']
    #allocation3 [shape = 's32[1]{0}', space=sflag, size = 0x4, scoped, tag = 'scoped memory for tpu_custom_call.1']
    #allocation4 [shape = 's32[1]{0}', space=sflag, size = 0x4, scoped, tag = 'scoped memory for tpu_custom_call.1']
    #allocation5 [shape = 'u8[32768]{0}', space=vmem, size = 0x8000, scoped, tag = 'input window, operand 2, single buffered']
    #allocation6 [shape = 's32[1]{0}', space=sflag, size = 0x4, scoped, tag = 'scoped memory for tpu_custom_call.1']
    #allocation7 [shape = 'u8[4096]{0}', space=vmem, size = 0x1000, scoped, tag = 'input window, operand 3, single buffered']
    #allocation8 [shape = 'u8[16384]{0}', space=vmem, size = 0x4000, scoped, tag = 'input window, operand 5, single buffered']
    #allocation9 [shape = 's32[1]{0}', space=sflag, size = 0x4, scoped, tag = 'scoped memory for tpu_custom_call.1']
    #allocation10 [shape = 'u8[49152]{0}', space=vmem, size = 0xc000, scoped, tag = 'input window, operand 9, single buffered']
    #allocation11 [shape = 'u8[49152]{0}', space=vmem, size = 0xc000, scoped, tag = 'input window, operand 10, single buffered']
    #allocation12 [shape = 's32[1]{0}', space=sflag, size = 0x4, scoped, tag = 'scoped memory for tpu_custom_call.1']
    #allocation13 [shape = 'u8[1536]{0}', space=vmem, size = 0x800, scoped, tag = 'input window, operand 12, single buffered']
    #allocation14 [shape = 'u8[4096]{0}', space=vmem, size = 0x1000, scoped, tag = 'output window, operand 0, single buffered']
    #allocation15 [shape = 'u8[4096]{0}', space=vmem, size = 0x1000, scoped, tag = 'output window, operand 1, single buffered']
    #allocation16 [shape = 's32[1]{0}', space=sflag, size = 0x4, scoped, tag = 'scoped memory for tpu_custom_call.1']
    %22 = vsyncpa [#allocation3], 0
    %23 = vsyncpa [#allocation6], 0
    %24 = vsyncpa [#allocation9], 0
    %25 = vsyncpa [#allocation12], 0
    %26 = vsyncpa [#allocation4], 0
    %27 = vsyncpa [#allocation16], 0
    // Predicated region
    $region2: #{tpu_custom_call.1} parent=1 // pred_check
      _
    $region3: #{tpu_custom_call.1} parent=1 // pred_check_branch
      %29 = sbr.rel (0) target = $region5
    $region4: #{tpu_custom_call.1} parent=1 // pred_region
      _
    $region5: #{tpu_custom_call.1} parent=1 // pred_fallthru
      _
    // Predicated region
    $region6: #{tpu_custom_call.1} parent=1 // pred_check
      _
    $region7: #{tpu_custom_call.1} parent=1 // pred_check_branch
      %31 = sbr.rel (0) target = $region9
    $region8: #{tpu_custom_call.1} parent=1 // pred_region
      %33 = vsyncadd [#allocation3], 0
      %s35 = sshll.u32 %s1, 4
      %s36 = int_to_ptr.hbm [resolvable:$true] %s35
      %s37 = sshll.u32 [#allocation2], 4
      %s38 = int_to_ptr.vmem [resolvable:$true] %s37
      %40 = dma.hbm_to_vmem [thread:$0]  %s36, 128, %s38, [#allocation3]
    $region9: #{tpu_custom_call.1} parent=1 // pred_fallthru
      _
    // Predicated region
    $region10: #{tpu_custom_call.1} parent=1 // pred_check
      _
    $region11: #{tpu_custom_call.1} parent=1 // pred_check_branch
      %42 = sbr.rel (0) target = $region13
    $region12: #{tpu_custom_call.1} parent=1 // pred_region
      %44 = vsyncadd [#allocation6], 0
      %s45 = sshll.u32 %s2, 4
      %s46 = int_to_ptr.hbm [resolvable:$true] %s45
      %s47 = sshll.u32 [#allocation5], 4
      %s48 = int_to_ptr.vmem [resolvable:$true] %s47
      %53 = dma.hbm_to_vmem [thread:$0]  %s46, 1024, %s48, [#allocation6], 128, 128, 8
    $region13: #{tpu_custom_call.1} parent=1 // pred_fallthru
      _
    // Predicated region
    $region14: #{tpu_custom_call.1} parent=1 // pred_check
      _
    $region15: #{tpu_custom_call.1} parent=1 // pred_check_branch
      %55 = sbr.rel (0) target = $region17
    $region16: #{tpu_custom_call.1} parent=1 // pred_region
      %57 = vsyncadd [#allocation6], 0
      %s59 = sshll.u32 %s3, 4
      %s60 = int_to_ptr.hbm [resolvable:$true] %s59
      %s61 = sshll.u32 [#allocation7], 4
      %s62 = int_to_ptr.vmem [resolvable:$true] %s61
      %64 = dma.hbm_to_vmem [thread:$0]  %s60, 128, %s62, [#allocation6]
    $region17: #{tpu_custom_call.1} parent=1 // pred_fallthru
      _
    // Predicated region
    $region18: #{tpu_custom_call.1} parent=1 // pred_check
      _
    $region19: #{tpu_custom_call.1} parent=1 // pred_check_branch
      %66 = sbr.rel (0) target = $region21
    $region20: #{tpu_custom_call.1} parent=1 // pred_region
      _
    $region21: #{tpu_custom_call.1} parent=1 // pred_fallthru
      _
    // Predicated region
    $region22: #{tpu_custom_call.1} parent=1 // pred_check
      _
    $region23: #{tpu_custom_call.1} parent=1 // pred_check_branch
      %68 = sbr.rel (0) target = $region25
    $region24: #{tpu_custom_call.1} parent=1 // pred_region
      %70 = vsyncadd [#allocation9], 0
      %s71 = sshll.u32 %s5, 4
      %s72 = int_to_ptr.hbm [resolvable:$true] %s71
      %s73 = sshll.u32 [#allocation8], 4
      %s74 = int_to_ptr.vmem [resolvable:$true] %s73
      %79 = dma.hbm_to_vmem [thread:$0]  %s72, 512, %s74, [#allocation9], 128, 128, 8
    $region25: #{tpu_custom_call.1} parent=1 // pred_fallthru
      _
    // Predicated region
    $region26: #{tpu_custom_call.1} parent=1 // pred_check
      _
    $region27: #{tpu_custom_call.1} parent=1 // pred_check_branch
      %81 = sbr.rel (0) target = $region29
    $region28: #{tpu_custom_call.1} parent=1 // pred_region
      _
    $region29: #{tpu_custom_call.1} parent=1 // pred_fallthru
      _
    // Predicated region
    $region30: #{tpu_custom_call.1} parent=1 // pred_check
      _
    $region31: #{tpu_custom_call.1} parent=1 // pred_check_branch
      %83 = sbr.rel (0) target = $region33
    $region32: #{tpu_custom_call.1} parent=1 // pred_region
      _
    $region33: #{tpu_custom_call.1} parent=1 // pred_fallthru
      _
    // Predicated region
    $region34: #{tpu_custom_call.1} parent=1 // pred_check
      _
    $region35: #{tpu_custom_call.1} parent=1 // pred_check_branch
      %85 = sbr.rel (0) target = $region37
    $region36: #{tpu_custom_call.1} parent=1 // pred_region
      _
    $region37: #{tpu_custom_call.1} parent=1 // pred_fallthru
      _
    // Predicated region
    $region38: #{tpu_custom_call.1} parent=1 // pred_check
      _
    $region39: #{tpu_custom_call.1} parent=1 // pred_check_branch
      %87 = sbr.rel (0) target = $region41
    $region40: #{tpu_custom_call.1} parent=1 // pred_region
      %89 = vsyncadd [#allocation9], 0
      %s90 = sshll.u32 %s9, 4
      %s91 = int_to_ptr.hbm [resolvable:$true] %s90
      %s92 = sshll.u32 [#allocation10], 4
      %s93 = int_to_ptr.vmem [resolvable:$true] %s92
      %98 = dma.hbm_to_vmem [thread:$0]  %s91, 1536, %s93, [#allocation9], 128, 128, 8
    $region41: #{tpu_custom_call.1} parent=1 // pred_fallthru
      _
    // Predicated region
    $region42: #{tpu_custom_call.1} parent=1 // pred_check
      _
    $region43: #{tpu_custom_call.1} parent=1 // pred_check_branch
      %100 = sbr.rel (0) target = $region45
    $region44: #{tpu_custom_call.1} parent=1 // pred_region
      %102 = vsyncadd [#allocation12], 0
      %s103 = sshll.u32 %s10, 4
      %s104 = int_to_ptr.hbm [resolvable:$true] %s103
      %s105 = sshll.u32 [#allocation11], 4
      %s106 = int_to_ptr.vmem [resolvable:$true] %s105
      %111 = dma.hbm_to_vmem [thread:$0]  %s104, 1536, %s106, [#allocation12], 128, 128, 8
    $region45: #{tpu_custom_call.1} parent=1 // pred_fallthru
      _
    // Predicated region
    $region46: #{tpu_custom_call.1} parent=1 // pred_check
      _
    $region47: #{tpu_custom_call.1} parent=1 // pred_check_branch
      %113 = sbr.rel (0) target = $region49
    $region48: #{tpu_custom_call.1} parent=1 // pred_region
      _
    $region49: #{tpu_custom_call.1} parent=1 // pred_fallthru
      _
    // Predicated region
    $region50: #{tpu_custom_call.1} parent=1 // pred_check
      _
    $region51: #{tpu_custom_call.1} parent=1 // pred_check_branch
      %115 = sbr.rel (0) target = $region53
    $region52: #{tpu_custom_call.1} parent=1 // pred_region
      %117 = vsyncadd [#allocation12], 0
      %s118 = sshll.u32 %s12, 4
      %s119 = int_to_ptr.hbm [resolvable:$true] %s118
      %s120 = sshll.u32 [#allocation13], 4
      %s121 = int_to_ptr.vmem [resolvable:$true] %s120
      %126 = dma.hbm_to_vmem [thread:$0]  %s119, 48, %s121, [#allocation12], 16, 16, 1
    $region53: #{tpu_custom_call.1} parent=1 // pred_fallthru
      _
    // Predicated region
    $region54: #{tpu_custom_call.1} parent=1 // pred_check
      _
    $region55: #{tpu_custom_call.1} parent=1 // pred_check_branch
      %128 = sbr.rel (0) target = $region57
    $region56: #{tpu_custom_call.1} parent=1 // pred_region
      _
    $region57: #{tpu_custom_call.1} parent=1 // pred_fallthru
      _
    // Predicated region
    $region58: #{tpu_custom_call.1} parent=1 // pred_check
      _
    $region59: #{tpu_custom_call.1} parent=1 // pred_check_branch
      %130 = sbr.rel (0) target = $region61
    $region60: #{tpu_custom_call.1} parent=1 // pred_region
      _
    $region61: #{tpu_custom_call.1} parent=1 // pred_fallthru
      _
    // Predicated region
    $region62: #{tpu_custom_call.1} parent=1 // pred_check
      _
    $region63: #{tpu_custom_call.1} parent=1 // pred_check_branch
      %132 = sbr.rel (0) target = $region65
    $region64: #{tpu_custom_call.1} parent=1 // pred_region
      %134 = dma.done [#allocation3], 128
    $region65: #{tpu_custom_call.1} parent=1 // pred_fallthru
      _
    // Predicated region
    $region66: #{tpu_custom_call.1} parent=1 // pred_check
      _
    $region67: #{tpu_custom_call.1} parent=1 // pred_check_branch
      %136 = sbr.rel (0) target = $region69
    $region68: #{tpu_custom_call.1} parent=1 // pred_region
      %138 = dma.done [#allocation6], 1024
    $region69: #{tpu_custom_call.1} parent=1 // pred_fallthru
      _
    // Predicated region
    $region70: #{tpu_custom_call.1} parent=1 // pred_check
      _
    $region71: #{tpu_custom_call.1} parent=1 // pred_check_branch
      %140 = sbr.rel (0) target = $region73
    $region72: #{tpu_custom_call.1} parent=1 // pred_region
      %142 = dma.done [#allocation6], 128
    $region73: #{tpu_custom_call.1} parent=1 // pred_fallthru
      _
    // Predicated region
    $region74: #{tpu_custom_call.1} parent=1 // pred_check
      _
    $region75: #{tpu_custom_call.1} parent=1 // pred_check_branch
      %144 = sbr.rel (0) target = $region77
    $region76: #{tpu_custom_call.1} parent=1 // pred_region
      %146 = dma.done [#allocation9], 512
    $region77: #{tpu_custom_call.1} parent=1 // pred_fallthru
      _
    // Predicated region
    $region78: #{tpu_custom_call.1} parent=1 // pred_check
      _
    $region79: #{tpu_custom_call.1} parent=1 // pred_check_branch
      %148 = sbr.rel (0) target = $region81
    $region80: #{tpu_custom_call.1} parent=1 // pred_region
      %150 = dma.done [#allocation9], 1536
    $region81: #{tpu_custom_call.1} parent=1 // pred_fallthru
      _
    // Predicated region
    $region82: #{tpu_custom_call.1} parent=1 // pred_check
      _
    $region83: #{tpu_custom_call.1} parent=1 // pred_check_branch
      %152 = sbr.rel (0) target = $region85
    $region84: #{tpu_custom_call.1} parent=1 // pred_region
      %154 = dma.done [#allocation12], 1536
    $region85: #{tpu_custom_call.1} parent=1 // pred_fallthru
      _
    // Predicated region
    $region86: #{tpu_custom_call.1} parent=1 // pred_check
      _
    $region87: #{tpu_custom_call.1} parent=1 // pred_check_branch
      %156 = sbr.rel (0) target = $region89
    $region88: #{tpu_custom_call.1} parent=1 // pred_region
      %158 = dma.done [#allocation12], 48
    $region89: #{tpu_custom_call.1} parent=1 // pred_fallthru
      _
    %v159 = vld [vmem:[#allocation2] sm:$0xff]
    %v160 = vld [vmem:[#allocation5] sm:$0xff]
    %v161 = vld [vmem:[#allocation5 + $0x8] sm:$0xff]
    %v162 = vld [vmem:[#allocation5 + $0x10] sm:$0xff]
    %v163 = vld [vmem:[#allocation5 + $0x18] sm:$0xff]
    %v164 = vld [vmem:[#allocation5 + $0x20] sm:$0xff]
    %v165 = vld [vmem:[#allocation5 + $0x28] sm:$0xff]
    %v166 = vld [vmem:[#allocation5 + $0x30] sm:$0xff]
    %v167 = vld [vmem:[#allocation5 + $0x38] sm:$0xff]
    %v168 = vld [vmem:[#allocation7] sm:$0xff]
    %v169 = vld [vmem:[%s0] sm:$0xff]
    %v170 = vlaneseq
    %v171 = vand.u32 %v170, 127
    %172 = vset.pattern.permute.xlu0 0
    %173 = vperm.xlu0 %172, %v169
    %v174 = vpop.permute.xlu0 %173
    %vm175 = vcmp.eq.s32.totalorder %v171, %v174
    %v176 = vsel %vm175, 1, 0
    %v177 = vcvt.s32.f32 %v176
    %v178 = vld [vmem:[%s4] sm:$0xff]
    %v179 = vld [vmem:[%s4 + $0x8] sm:$0xff]
    %vm180 = vcmask 130048
    %v182 = vsel %vm180, %v177, 0
    %184 = vmatpush.msra.mxu0 0.0
    %185 = vmatpush.msra.mxu0 0.0
    %186 = vmatpush.msra.mxu0 0.0
    %187 = vmatpush.msra.mxu0 0.0
    %188 = vmatpush.msra.mxu0 0.0
    %189 = vmatpush.msra.mxu0 0.0
    %190 = vmatpush.msra.mxu0 0.0
    %191 = vmatpush.msra.mxu0 0.0
    %192 = vmatpush.msra.mxu0 0.0
    %193 = vmatpush.msra.mxu0 0.0
    %194 = vmatpush.msra.mxu0 0.0
    %195 = vmatpush.msra.mxu0 0.0
    %196 = vmatpush.msra.mxu0 0.0
    %197 = vmatpush.msra.mxu0 0.0
    %198 = vmatpush.msra.mxu0 %v179
    %199 = vmatpush.msra.mxu0 %v178
    %200 = vmatmul.f32.gmra.mxu0 %v182
    %v201 = vpop.f32.mrf.mxu0
    %v202 = vadd.f32 0.0, %v201
    %203 = vdwg.mxu0
    %v204 = vld [vmem:[#allocation8] sm:$0xff]
    %v205 = vld [vmem:[#allocation8 + $0x8] sm:$0xff]
    %v206 = vld [vmem:[#allocation8 + $0x10] sm:$0xff]
    %v207 = vld [vmem:[#allocation8 + $0x18] sm:$0xff]
    %v208 = vld [vmem:[%s6] sm:$0xff]
    %v209 = vld [vmem:[%s6 + $0x8] sm:$0xff]
    %v210 = vld [vmem:[%s6 + $0x10] sm:$0xff]
    %v211 = vld [vmem:[%s6 + $0x18] sm:$0xff]
    %v212 = vld [vmem:[%s6 + $0x20] sm:$0xff]
    %v213 = vld [vmem:[%s6 + $0x28] sm:$0xff]
    %v214 = vld [vmem:[%s6 + $0x30] sm:$0xff]
    %v215 = vld [vmem:[%s6 + $0x38] sm:$0xff]
    %v216 = vld [vmem:[%s7] sm:$0x1]
    %vm217 = vcmask 261120
    %v219 = vsel %vm217, %v159, 0
    %221 = vmatpush.msra.mxu0 0.0
    %222 = vmatpush.msra.mxu0 0.0
    %223 = vmatpush.msra.mxu0 0.0
    %224 = vmatpush.msra.mxu0 0.0
    %225 = vmatpush.msra.mxu0 0.0
    %226 = vmatpush.msra.mxu0 0.0
    %227 = vmatpush.msra.mxu0 0.0
    %228 = vmatpush.msra.mxu0 0.0
    %229 = vmatpush.msra.mxu0 0.0
    %230 = vmatpush.msra.mxu0 0.0
    %231 = vmatpush.msra.mxu0 0.0
    %232 = vmatpush.msra.mxu0 0.0
    %233 = vmatpush.msra.mxu0 %v207
    %234 = vmatpush.msra.mxu0 %v206
    %235 = vmatpush.msra.mxu0 %v205
    %236 = vmatpush.msra.mxu0 %v204
    %237 = vmatmul.f32.gmra.mxu0 %v219
    %v238 = vpop.f32.mrf.mxu0
    %v239 = vadd.f32 0.0, %v238
    %240 = vdwg.mxu0
    %v242 = vperm.slane %v216, 0
    %v244 = vmul.f32 %v159, %v242
    %v245 = vsel %vm217, %v244, 0.0
    %246 = vadd.xlane.f32.xlu0 %v245
    %v247 = vpop.xlane.xlu0 %246
    %v249 = vrot.slane %v239, 1
    %v250 = vrot.slane %v239, 2
    %v251 = vrot.slane %v239, 3
    %v252 = vrot.slane %v239, 4
    %v253 = vrot.slane %v239, 5
    %v254 = vrot.slane %v239, 6
    %v255 = vrot.slane %v239, 7
    %v256 = vperm.slane %v239, 0
    %v257 = vperm.slane %v249, 0
    %v258 = vperm.slane %v250, 0
    %v259 = vperm.slane %v251, 0
    %v260 = vperm.slane %v252, 0
    %v261 = vperm.slane %v253, 0
    %v262 = vperm.slane %v254, 0
    %v263 = vperm.slane %v255, 0
    %v272 = vmul.f32 %v256, %v160
    %v273 = vmul.f32 %v257, %v161
    %v274 = vmul.f32 %v258, %v162
    %v275 = vmul.f32 %v259, %v163
    %v276 = vmul.f32 %v260, %v164
    %v277 = vmul.f32 %v261, %v165
    %v278 = vmul.f32 %v262, %v166
    %v279 = vmul.f32 %v263, %v167
    %vm280 = vcmask 523264
    %v281 = vsel %vm280, %v272, 0.0
    %282 = vadd.xlane.f32.xlu0 %v281
    %v283 = vpop.xlane.xlu0 %282
    %v284 = vsel %vm280, %v273, 0.0
    %285 = vadd.xlane.f32.xlu0 %v284
    %v286 = vpop.xlane.xlu0 %285
    %v287 = vsel %vm280, %v274, 0.0
    %288 = vadd.xlane.f32.xlu0 %v287
    %v289 = vpop.xlane.xlu0 %288
    %v290 = vsel %vm280, %v275, 0.0
    %291 = vadd.xlane.f32.xlu0 %v290
    %v292 = vpop.xlane.xlu0 %291
    %v293 = vsel %vm280, %v276, 0.0
    %294 = vadd.xlane.f32.xlu0 %v293
    %v295 = vpop.xlane.xlu0 %294
    %v296 = vsel %vm280, %v277, 0.0
    %297 = vadd.xlane.f32.xlu0 %v296
    %v298 = vpop.xlane.xlu0 %297
    %v299 = vsel %vm280, %v278, 0.0
    %300 = vadd.xlane.f32.xlu0 %v299
    %v301 = vpop.xlane.xlu0 %300
    %v302 = vsel %vm280, %v279, 0.0
    %303 = vadd.xlane.f32.xlu0 %v302
    %v304 = vpop.xlane.xlu0 %303
    %v306 = vperm.slane %v247, 0
    %v307 = vperm.slane %v247, 1
    %v308 = vperm.slane %v247, 2
    %v309 = vperm.slane %v247, 3
    %v310 = vperm.slane %v247, 4
    %v311 = vperm.slane %v247, 5
    %v312 = vperm.slane %v247, 6
    %v313 = vperm.slane %v247, 7
    %v322 = vadd.f32 %v283, %v306
    %v323 = vadd.f32 %v286, %v307
    %v324 = vadd.f32 %v289, %v308
    %v325 = vadd.f32 %v292, %v309
    %v326 = vadd.f32 %v295, %v310
    %v327 = vadd.f32 %v298, %v311
    %v328 = vadd.f32 %v301, %v312
    %v329 = vadd.f32 %v304, %v313
    %v331 = vperm.slane %v168, 0
    %v332 = vlaneseq
    %v333 = vshrl.u32 %v332, 7
    %335 = vset.pattern.permute.xlu0 %v333
    %336 = vperm.xlu0 %335, %v331
    %v337 = vpop.permute.xlu0 %336
    %v338 = vperm.slane %v168, 1
    %v339 = vlaneseq
    %v340 = vshrl.u32 %v339, 7
    %342 = vset.pattern.permute.xlu0 %v340
    %343 = vperm.xlu0 %342, %v338
    %v344 = vpop.permute.xlu0 %343
    %v345 = vperm.slane %v168, 2
    %v346 = vlaneseq
    %v347 = vshrl.u32 %v346, 7
    %349 = vset.pattern.permute.xlu0 %v347
    %350 = vperm.xlu0 %349, %v345
    %v351 = vpop.permute.xlu0 %350
    %v352 = vperm.slane %v168, 3
    %v353 = vlaneseq
    %v354 = vshrl.u32 %v353, 7
    %356 = vset.pattern.permute.xlu0 %v354
    %357 = vperm.xlu0 %356, %v352
    %v358 = vpop.permute.xlu0 %357
    %v359 = vperm.slane %v168, 4
    %v360 = vlaneseq
    %v361 = vshrl.u32 %v360, 7
    %363 = vset.pattern.permute.xlu0 %v361
    %364 = vperm.xlu0 %363, %v359
    %v365 = vpop.permute.xlu0 %364
    %v366 = vperm.slane %v168, 5
    %v367 = vlaneseq
    %v368 = vshrl.u32 %v367, 7
    %370 = vset.pattern.permute.xlu0 %v368
    %371 = vperm.xlu0 %370, %v366
    %v372 = vpop.permute.xlu0 %371
    %v373 = vperm.slane %v168, 6
    %v374 = vlaneseq
    %v375 = vshrl.u32 %v374, 7
    %377 = vset.pattern.permute.xlu0 %v375
    %378 = vperm.xlu0 %377, %v373
    %v379 = vpop.permute.xlu0 %378
    %v380 = vperm.slane %v168, 7
    %v381 = vlaneseq
    %v382 = vshrl.u32 %v381, 7
    %384 = vset.pattern.permute.xlu0 %v382
    %385 = vperm.xlu0 %384, %v380
    %v386 = vpop.permute.xlu0 %385
    %v395 = vadd.f32 %v322, %v337
    %v396 = vadd.f32 %v323, %v344
    %v397 = vadd.f32 %v324, %v351
    %v398 = vadd.f32 %v325, %v358
    %v399 = vadd.f32 %v326, %v365
    %v400 = vadd.f32 %v327, %v372
    %v401 = vadd.f32 %v328, %v379
    %v402 = vadd.f32 %v329, %v386
    %411 = vset.pattern.permute.xlu0 0
    %412 = vperm.xlu0 %411, %v395
    %v413 = vpop.permute.xlu0 %412
    %414 = vset.pattern.permute.xlu0 0
    %415 = vperm.xlu0 %414, %v396
    %v416 = vpop.permute.xlu0 %415
    %417 = vset.pattern.permute.xlu0 0
    %418 = vperm.xlu0 %417, %v397
    %v419 = vpop.permute.xlu0 %418
    %420 = vset.pattern.permute.xlu0 0
    %421 = vperm.xlu0 %420, %v398
    %v422 = vpop.permute.xlu0 %421
    %423 = vset.pattern.permute.xlu0 0
    %424 = vperm.xlu0 %423, %v399
    %v425 = vpop.permute.xlu0 %424
    %426 = vset.pattern.permute.xlu0 0
    %427 = vperm.xlu0 %426, %v400
    %v428 = vpop.permute.xlu0 %427
    %429 = vset.pattern.permute.xlu0 0
    %430 = vperm.xlu0 %429, %v401
    %v431 = vpop.permute.xlu0 %430
    %432 = vset.pattern.permute.xlu0 0
    %433 = vperm.xlu0 %432, %v402
    %v434 = vpop.permute.xlu0 %433
    %v435 = vperm.slane %v413, %v171
    %v436 = vperm.slane %v416, %v171
    %v437 = vperm.slane %v419, %v171
    %v438 = vperm.slane %v422, %v171
    %v439 = vperm.slane %v425, %v171
    %v440 = vperm.slane %v428, %v171
    %v441 = vperm.slane %v431, %v171
    %v442 = vperm.slane %v434, %v171
    %vm443 = vcmask 1041409
    %v444 = vsel %vm443, %v436, %v435
    %vm445 = vcmask 1042434
    %v446 = vsel %vm445, %v437, %v444
    %vm447 = vcmask 1043459
    %v448 = vsel %vm447, %v438, %v446
    %vm449 = vcmask 1044484
    %v450 = vsel %vm449, %v439, %v448
    %vm451 = vcmask 1045509
    %v452 = vsel %vm451, %v440, %v450
    %vm453 = vcmask 1046534
    %v454 = vsel %vm453, %v441, %v452
    %vm455 = vcmask 1047559
    %v456 = vsel %vm455, %v442, %v454
    %vm458 = vcmask 64512
    %v459 = vsel %vm458, %v456, -inf
    %460 = vmax.xlane.f32.xlu0 %v459
    %v461 = vpop.xlane.xlu0 %460
    %v463 = vperm.slane %v461, 0
    %v464 = vperm.slane %v461, 1
    %v465 = vperm.slane %v461, 2
    %v466 = vperm.slane %v461, 3
    %v467 = vperm.slane %v461, 4
    %v468 = vperm.slane %v461, 5
    %v469 = vperm.slane %v461, 6
    %v470 = vperm.slane %v461, 7
    %v479 = vsub.f32 %v395, %v463
    %v480 = vsub.f32 %v396, %v464
    %v481 = vsub.f32 %v397, %v465
    %v482 = vsub.f32 %v398, %v466
    %v483 = vsub.f32 %v399, %v467
    %v484 = vsub.f32 %v400, %v468
    %v485 = vsub.f32 %v401, %v469
    %v486 = vsub.f32 %v402, %v470
    %v487 = vmul.f32 %v479, 1.442695
    %v488 = vpow.pop %v487
    %v489 = vmul.f32 %v480, 1.442695
    %v490 = vpow.pop %v489
    %v491 = vmul.f32 %v481, 1.442695
    %v492 = vpow.pop %v491
    %v493 = vmul.f32 %v482, 1.442695
    %v494 = vpow.pop %v493
    %v495 = vmul.f32 %v483, 1.442695
    %v496 = vpow.pop %v495
    %v497 = vmul.f32 %v484, 1.442695
    %v498 = vpow.pop %v497
    %v499 = vmul.f32 %v485, 1.442695
    %v500 = vpow.pop %v499
    %v501 = vmul.f32 %v486, 1.442695
    %v502 = vpow.pop %v501
    %511 = vset.pattern.permute.xlu0 0
    %512 = vperm.xlu0 %511, %v488
    %v513 = vpop.permute.xlu0 %512
    %514 = vset.pattern.permute.xlu0 0
    %515 = vperm.xlu0 %514, %v490
    %v516 = vpop.permute.xlu0 %515
    %517 = vset.pattern.permute.xlu0 0
    %518 = vperm.xlu0 %517, %v492
    %v519 = vpop.permute.xlu0 %518
    %520 = vset.pattern.permute.xlu0 0
    %521 = vperm.xlu0 %520, %v494
    %v522 = vpop.permute.xlu0 %521
    %523 = vset.pattern.permute.xlu0 0
    %524 = vperm.xlu0 %523, %v496
    %v525 = vpop.permute.xlu0 %524
    %526 = vset.pattern.permute.xlu0 0
    %527 = vperm.xlu0 %526, %v498
    %v528 = vpop.permute.xlu0 %527
    %529 = vset.pattern.permute.xlu0 0
    %530 = vperm.xlu0 %529, %v500
    %v531 = vpop.permute.xlu0 %530
    %532 = vset.pattern.permute.xlu0 0
    %533 = vperm.xlu0 %532, %v502
    %v534 = vpop.permute.xlu0 %533
    %v535 = vperm.slane %v513, %v171
    %v536 = vperm.slane %v516, %v171
    %v537 = vperm.slane %v519, %v171
    %v538 = vperm.slane %v522, %v171
    %v539 = vperm.slane %v525, %v171
    %v540 = vperm.slane %v528, %v171
    %v541 = vperm.slane %v531, %v171
    %v542 = vperm.slane %v534, %v171
    %v543 = vsel %vm443, %v536, %v535
    %v544 = vsel %vm445, %v537, %v543
    %v545 = vsel %vm447, %v538, %v544
    %v546 = vsel %vm449, %v539, %v545
    %v547 = vsel %vm451, %v540, %v546
    %v548 = vsel %vm453, %v541, %v547
    %v549 = vsel %vm455, %v542, %v548
    %v551 = vsel %vm458, %v549, 0.0
    %552 = vadd.xlane.f32.xlu0 %v551
    %v553 = vpop.xlane.xlu0 %552
    %v554 = vrcp.pop %v553
    %v556 = vperm.slane %v554, 0
    %v557 = vperm.slane %v554, 1
    %v558 = vperm.slane %v554, 2
    %v559 = vperm.slane %v554, 3
    %v560 = vperm.slane %v554, 4
    %v561 = vperm.slane %v554, 5
    %v562 = vperm.slane %v554, 6
    %v563 = vperm.slane %v554, 7
    %v572 = vmul.f32 %v488, %v556
    %v573 = vmul.f32 %v490, %v557
    %v574 = vmul.f32 %v492, %v558
    %v575 = vmul.f32 %v494, %v559
    %v576 = vmul.f32 %v496, %v560
    %v577 = vmul.f32 %v498, %v561
    %v578 = vmul.f32 %v500, %v562
    %v579 = vmul.f32 %v502, %v563
    %581 = vset.pattern.permute.xlu0 0
    %582 = vperm.xlu0 %581, %v572
    %v583 = vpop.permute.xlu0 %582
    %586 = vset.pattern.permute.xlu0 0
    %587 = vperm.xlu0 %586, %v573
    %v588 = vpop.permute.xlu0 %587
    %591 = vset.pattern.permute.xlu0 0
    %592 = vperm.xlu0 %591, %v574
    %v593 = vpop.permute.xlu0 %592
    %596 = vset.pattern.permute.xlu0 0
    %597 = vperm.xlu0 %596, %v575
    %v598 = vpop.permute.xlu0 %597
    %601 = vset.pattern.permute.xlu0 0
    %602 = vperm.xlu0 %601, %v576
    %v603 = vpop.permute.xlu0 %602
    %606 = vset.pattern.permute.xlu0 0
    %607 = vperm.xlu0 %606, %v577
    %v608 = vpop.permute.xlu0 %607
    %611 = vset.pattern.permute.xlu0 0
    %612 = vperm.xlu0 %611, %v578
    %v613 = vpop.permute.xlu0 %612
    %616 = vset.pattern.permute.xlu0 0
    %617 = vperm.xlu0 %616, %v579
    %v618 = vpop.permute.xlu0 %617
    %v620 = vmul.f32 %v583, %v160
    %v621 = vmul.f32 %v588, %v161
    %v622 = vmul.f32 %v593, %v162
    %v623 = vmul.f32 %v598, %v163
    %v624 = vmul.f32 %v603, %v164
    %v625 = vmul.f32 %v608, %v165
    %v626 = vmul.f32 %v613, %v166
    %v627 = vmul.f32 %v618, %v167
    %v628 = vsel %vm280, %v620, 0.0
    %v629 = vrot.slane %v628, 4
    %v630 = vadd.f32 %v628, %v629
    %v631 = vrot.slane %v630, 2
    %v632 = vadd.f32 %v630, %v631
    %v633 = vrot.slane %v632, 1
    %v634 = vadd.f32 %v632, %v633
    %v635 = vsel %vm280, %v621, 0.0
    %v636 = vrot.slane %v635, 4
    %v637 = vadd.f32 %v635, %v636
    %v638 = vrot.slane %v637, 2
    %v639 = vadd.f32 %v637, %v638
    %v640 = vrot.slane %v639, 1
    %v641 = vadd.f32 %v639, %v640
    %v642 = vsel %vm280, %v622, 0.0
    %v643 = vrot.slane %v642, 4
    %v644 = vadd.f32 %v642, %v643
    %v645 = vrot.slane %v644, 2
    %v646 = vadd.f32 %v644, %v645
    %v647 = vrot.slane %v646, 1
    %v648 = vadd.f32 %v646, %v647
    %v649 = vsel %vm280, %v623, 0.0
    %v650 = vrot.slane %v649, 4
    %v651 = vadd.f32 %v649, %v650
    %v652 = vrot.slane %v651, 2
    %v653 = vadd.f32 %v651, %v652
    %v654 = vrot.slane %v653, 1
    %v655 = vadd.f32 %v653, %v654
    %v656 = vsel %vm280, %v624, 0.0
    %v657 = vrot.slane %v656, 4
    %v658 = vadd.f32 %v656, %v657
    %v659 = vrot.slane %v658, 2
    %v660 = vadd.f32 %v658, %v659
    %v661 = vrot.slane %v660, 1
    %v662 = vadd.f32 %v660, %v661
    %v663 = vsel %vm280, %v625, 0.0
    %v664 = vrot.slane %v663, 4
    %v665 = vadd.f32 %v663, %v664
    %v666 = vrot.slane %v665, 2
    %v667 = vadd.f32 %v665, %v666
    %v668 = vrot.slane %v667, 1
    %v669 = vadd.f32 %v667, %v668
    %v670 = vsel %vm280, %v626, 0.0
    %v671 = vrot.slane %v670, 4
    %v672 = vadd.f32 %v670, %v671
    %v673 = vrot.slane %v672, 2
    %v674 = vadd.f32 %v672, %v673
    %v675 = vrot.slane %v674, 1
    %v676 = vadd.f32 %v674, %v675
    %v677 = vsel %vm280, %v627, 0.0
    %v678 = vrot.slane %v677, 4
    %v679 = vadd.f32 %v677, %v678
    %v680 = vrot.slane %v679, 2
    %v681 = vadd.f32 %v679, %v680
    %v682 = vrot.slane %v681, 1
    %v683 = vadd.f32 %v681, %v682
    %v692 = vsel %vm443, %v641, %v634
    %v693 = vsel %vm445, %v648, %v692
    %v694 = vsel %vm447, %v655, %v693
    %v695 = vsel %vm449, %v662, %v694
    %v696 = vsel %vm451, %v669, %v695
    %v697 = vsel %vm453, %v676, %v696
    %v698 = vsel %vm455, %v683, %v697
    %v699 = vsel %vm280, %v698, 0
    %701 = vmatpush.msra.mxu0 0.0
    %702 = vmatpush.msra.mxu0 0.0
    %703 = vmatpush.msra.mxu0 0.0
    %704 = vmatpush.msra.mxu0 0.0
    %705 = vmatpush.msra.mxu0 0.0
    %706 = vmatpush.msra.mxu0 0.0
    %707 = vmatpush.msra.mxu0 0.0
    %708 = vmatpush.msra.mxu0 0.0
    %709 = vmatpush.msra.mxu0 %v215
    %710 = vmatpush.msra.mxu0 %v214
    %711 = vmatpush.msra.mxu0 %v213
    %712 = vmatpush.msra.mxu0 %v212
    %713 = vmatpush.msra.mxu0 %v211
    %714 = vmatpush.msra.mxu0 %v210
    %715 = vmatpush.msra.mxu0 %v209
    %716 = vmatpush.msra.mxu0 %v208
    %717 = vmatmul.f32.gmra.mxu0 %v699
    %v718 = vpop.f32.mrf.mxu0
    %v719 = vadd.f32 %v242, %v718
    %720 = vdwg.mxu0
    %v721 = vld [vmem:[%s8] sm:$0xff]
    %v722 = vld [vmem:[%s8 + $0x8] sm:$0xff]
    %v723 = vld [vmem:[%s8 + $0x10] sm:$0xff]
    %v724 = vld [vmem:[%s8 + $0x18] sm:$0xff]
    %v725 = vld [vmem:[#allocation10] sm:$0xff]
    %v726 = vld [vmem:[#allocation10 + $0x8] sm:$0xff]
    %v727 = vld [vmem:[#allocation10 + $0x10] sm:$0xff]
    %v728 = vld [vmem:[#allocation10 + $0x18] sm:$0xff]
    %v730 = vsel %vm217, %v719, 0
    %732 = vmatpush.msra.mxu0 0.0
    %733 = vmatpush.msra.mxu0 0.0
    %734 = vmatpush.msra.mxu0 0.0
    %735 = vmatpush.msra.mxu0 0.0
    %736 = vmatpush.msra.mxu0 0.0
    %737 = vmatpush.msra.mxu0 0.0
    %738 = vmatpush.msra.mxu0 0.0
    %739 = vmatpush.msra.mxu0 0.0
    %740 = vmatpush.msra.mxu0 0.0
    %741 = vmatpush.msra.mxu0 0.0
    %742 = vmatpush.msra.mxu0 0.0
    %743 = vmatpush.msra.mxu0 0.0
    %744 = vmatpush.msra.mxu0 %v728
    %745 = vmatpush.msra.mxu0 %v727
    %746 = vmatpush.msra.mxu0 %v726
    %747 = vmatpush.msra.mxu0 %v725
    %748 = vmatmul.f32.gmra.mxu0 %v730
    %v749 = vpop.f32.mrf.mxu0
    %v750 = vadd.f32 0.0, %v749
    %751 = vdwg.mxu0
    %v753 = vsel %vm217, %v202, 0
    %755 = vmatpush.msra.mxu0 0.0
    %756 = vmatpush.msra.mxu0 0.0
    %757 = vmatpush.msra.mxu0 0.0
    %758 = vmatpush.msra.mxu0 0.0
    %759 = vmatpush.msra.mxu0 0.0
    %760 = vmatpush.msra.mxu0 0.0
    %761 = vmatpush.msra.mxu0 0.0
    %762 = vmatpush.msra.mxu0 0.0
    %763 = vmatpush.msra.mxu0 0.0
    %764 = vmatpush.msra.mxu0 0.0
    %765 = vmatpush.msra.mxu0 0.0
    %766 = vmatpush.msra.mxu0 0.0
    %767 = vmatpush.msra.mxu0 %v724
    %768 = vmatpush.msra.mxu0 %v723
    %769 = vmatpush.msra.mxu0 %v722
    %770 = vmatpush.msra.mxu0 %v721
    %771 = vmatmul.f32.gmra.mxu0 %v753
    %v772 = vpop.f32.mrf.mxu0
    %v773 = vadd.f32 %v750, %v772
    %774 = vdwg.mxu0
    %v775 = vld [vmem:[%s11] sm:$0x1]
    %v777 = vperm.slane %v775, 0
    %v779 = vadd.f32 %v773, %v777
    %v780 = vld [vmem:[#allocation11] sm:$0xff]
    %v781 = vld [vmem:[#allocation11 + $0x8] sm:$0xff]
    %v782 = vld [vmem:[#allocation11 + $0x10] sm:$0xff]
    %v783 = vld [vmem:[#allocation11 + $0x18] sm:$0xff]
    %v784 = vld [vmem:[#allocation13] sm:$0x1]
    %v786 = vperm.slane %v784, 0
    %788 = vmatpush.msra.mxu0 0.0
    %789 = vmatpush.msra.mxu0 0.0
    %790 = vmatpush.msra.mxu0 0.0
    %791 = vmatpush.msra.mxu0 0.0
    %792 = vmatpush.msra.mxu0 0.0
    %793 = vmatpush.msra.mxu0 0.0
    %794 = vmatpush.msra.mxu0 0.0
    %795 = vmatpush.msra.mxu0 0.0
    %796 = vmatpush.msra.mxu0 0.0
    %797 = vmatpush.msra.mxu0 0.0
    %798 = vmatpush.msra.mxu0 0.0
    %799 = vmatpush.msra.mxu0 0.0
    %800 = vmatpush.msra.mxu0 %v783
    %801 = vmatpush.msra.mxu0 %v782
    %802 = vmatpush.msra.mxu0 %v781
    %803 = vmatpush.msra.mxu0 %v780
    %804 = vmatmul.f32.gmra.mxu0 %v219
    %v805 = vpop.f32.mrf.mxu0
    %v806 = vadd.f32 %v786, %v805
    %807 = vdwg.mxu0
    %s808 = scalar_lea.vmem %s8, 32
    %v809 = vld [vmem:[%s808] sm:$0xff]
    %v810 = vld [vmem:[%s808 + $0x8] sm:$0xff]
    %v811 = vld [vmem:[%s808 + $0x10] sm:$0xff]
    %v812 = vld [vmem:[%s808 + $0x18] sm:$0xff]
    %s813 = scalar_lea.vmem [#allocation10], 32
    %v814 = vld [vmem:[%s813] sm:$0xff]
    %v815 = vld [vmem:[%s813 + $0x8] sm:$0xff]
    %v816 = vld [vmem:[%s813 + $0x10] sm:$0xff]
    %v817 = vld [vmem:[%s813 + $0x18] sm:$0xff]
    %818 = vmatpush.msra.mxu0 0.0
    %819 = vmatpush.msra.mxu0 0.0
    %820 = vmatpush.msra.mxu0 0.0
    %821 = vmatpush.msra.mxu0 0.0
    %822 = vmatpush.msra.mxu0 0.0
    %823 = vmatpush.msra.mxu0 0.0
    %824 = vmatpush.msra.mxu0 0.0
    %825 = vmatpush.msra.mxu0 0.0
    %826 = vmatpush.msra.mxu0 0.0
    %827 = vmatpush.msra.mxu0 0.0
    %828 = vmatpush.msra.mxu0 0.0
    %829 = vmatpush.msra.mxu0 0.0
    %830 = vmatpush.msra.mxu0 %v817
    %831 = vmatpush.msra.mxu0 %v816
    %832 = vmatpush.msra.mxu0 %v815
    %833 = vmatpush.msra.mxu0 %v814
    %834 = vmatmul.f32.gmra.mxu0 %v730
    %v835 = vpop.f32.mrf.mxu0
    %v836 = vadd.f32 0.0, %v835
    %837 = vdwg.mxu0
    %838 = vmatpush.msra.mxu0 0.0
    %839 = vmatpush.msra.mxu0 0.0
    %840 = vmatpush.msra.mxu0 0.0
    %841 = vmatpush.msra.mxu0 0.0
    %842 = vmatpush.msra.mxu0 0.0
    %843 = vmatpush.msra.mxu0 0.0
    %844 = vmatpush.msra.mxu0 0.0
    %845 = vmatpush.msra.mxu0 0.0
    %846 = vmatpush.msra.mxu0 0.0
    %847 = vmatpush.msra.mxu0 0.0
    %848 = vmatpush.msra.mxu0 0.0
    %849 = vmatpush.msra.mxu0 0.0
    %850 = vmatpush.msra.mxu0 %v812
    %851 = vmatpush.msra.mxu0 %v811
    %852 = vmatpush.msra.mxu0 %v810
    %853 = vmatpush.msra.mxu0 %v809
    %854 = vmatmul.f32.gmra.mxu0 %v753
    %v855 = vpop.f32.mrf.mxu0
    %v856 = vadd.f32 %v836, %v855
    %857 = vdwg.mxu0
    %s858 = scalar_lea.vmem %s11, 1
    %v859 = vld [vmem:[%s858] sm:$0x1]
    %v861 = vperm.slane %v859, 0
    %v863 = vadd.f32 %v856, %v861
    %s864 = scalar_lea.vmem [#allocation11], 32
    %v865 = vld [vmem:[%s864] sm:$0xff]
    %v866 = vld [vmem:[%s864 + $0x8] sm:$0xff]
    %v867 = vld [vmem:[%s864 + $0x10] sm:$0xff]
    %v868 = vld [vmem:[%s864 + $0x18] sm:$0xff]
    %s869 = scalar_lea.vmem [#allocation13], 1
    %v870 = vld [vmem:[%s869] sm:$0x1]
    %v872 = vperm.slane %v870, 0
    %874 = vmatpush.msra.mxu0 0.0
    %875 = vmatpush.msra.mxu0 0.0
    %876 = vmatpush.msra.mxu0 0.0
    %877 = vmatpush.msra.mxu0 0.0
    %878 = vmatpush.msra.mxu0 0.0
    %879 = vmatpush.msra.mxu0 0.0
    %880 = vmatpush.msra.mxu0 0.0
    %881 = vmatpush.msra.mxu0 0.0
    %882 = vmatpush.msra.mxu0 0.0
    %883 = vmatpush.msra.mxu0 0.0
    %884 = vmatpush.msra.mxu0 0.0
    %885 = vmatpush.msra.mxu0 0.0
    %886 = vmatpush.msra.mxu0 %v868
    %887 = vmatpush.msra.mxu0 %v867
    %888 = vmatpush.msra.mxu0 %v866
    %889 = vmatpush.msra.mxu0 %v865
    %890 = vmatmul.f32.gmra.mxu0 %v219
    %v891 = vpop.f32.mrf.mxu0
    %v892 = vadd.f32 %v872, %v891
    %893 = vdwg.mxu0
    %s894 = scalar_lea.vmem %s8, 64
    %v895 = vld [vmem:[%s894] sm:$0xff]
    %v896 = vld [vmem:[%s894 + $0x8] sm:$0xff]
    %v897 = vld [vmem:[%s894 + $0x10] sm:$0xff]
    %v898 = vld [vmem:[%s894 + $0x18] sm:$0xff]
    %s899 = scalar_lea.vmem [#allocation10], 64
    %v900 = vld [vmem:[%s899] sm:$0xff]
    %v901 = vld [vmem:[%s899 + $0x8] sm:$0xff]
    %v902 = vld [vmem:[%s899 + $0x10] sm:$0xff]
    %v903 = vld [vmem:[%s899 + $0x18] sm:$0xff]
    %904 = vmatpush.msra.mxu0 0.0
    %905 = vmatpush.msra.mxu0 0.0
    %906 = vmatpush.msra.mxu0 0.0
    %907 = vmatpush.msra.mxu0 0.0
    %908 = vmatpush.msra.mxu0 0.0
    %909 = vmatpush.msra.mxu0 0.0
    %910 = vmatpush.msra.mxu0 0.0
    %911 = vmatpush.msra.mxu0 0.0
    %912 = vmatpush.msra.mxu0 0.0
    %913 = vmatpush.msra.mxu0 0.0
    %914 = vmatpush.msra.mxu0 0.0
    %915 = vmatpush.msra.mxu0 0.0
    %916 = vmatpush.msra.mxu0 %v903
    %917 = vmatpush.msra.mxu0 %v902
    %918 = vmatpush.msra.mxu0 %v901
    %919 = vmatpush.msra.mxu0 %v900
    %920 = vmatmul.f32.gmra.mxu0 %v730
    %v921 = vpop.f32.mrf.mxu0
    %v922 = vadd.f32 0.0, %v921
    %923 = vdwg.mxu0
    %924 = vmatpush.msra.mxu0 0.0
    %925 = vmatpush.msra.mxu0 0.0
    %926 = vmatpush.msra.mxu0 0.0
    %927 = vmatpush.msra.mxu0 0.0
    %928 = vmatpush.msra.mxu0 0.0
    %929 = vmatpush.msra.mxu0 0.0
    %930 = vmatpush.msra.mxu0 0.0
    %931 = vmatpush.msra.mxu0 0.0
    %932 = vmatpush.msra.mxu0 0.0
    %933 = vmatpush.msra.mxu0 0.0
    %934 = vmatpush.msra.mxu0 0.0
    %935 = vmatpush.msra.mxu0 0.0
    %936 = vmatpush.msra.mxu0 %v898
    %937 = vmatpush.msra.mxu0 %v897
    %938 = vmatpush.msra.mxu0 %v896
    %939 = vmatpush.msra.mxu0 %v895
    %940 = vmatmul.f32.gmra.mxu0 %v753
    %v941 = vpop.f32.mrf.mxu0
    %v942 = vadd.f32 %v922, %v941
    %943 = vdwg.mxu0
    %s944 = scalar_lea.vmem %s11, 2
    %v945 = vld [vmem:[%s944] sm:$0x1]
    %v947 = vperm.slane %v945, 0
    %v949 = vadd.f32 %v942, %v947
    %s950 = scalar_lea.vmem [#allocation11], 64
    %v951 = vld [vmem:[%s950] sm:$0xff]
    %v952 = vld [vmem:[%s950 + $0x8] sm:$0xff]
    %v953 = vld [vmem:[%s950 + $0x10] sm:$0xff]
    %v954 = vld [vmem:[%s950 + $0x18] sm:$0xff]
    %s955 = scalar_lea.vmem [#allocation13], 2
    %v956 = vld [vmem:[%s955] sm:$0x1]
    %v958 = vperm.slane %v956, 0
    %960 = vmatpush.msra.mxu0 0.0
    %961 = vmatpush.msra.mxu0 0.0
    %962 = vmatpush.msra.mxu0 0.0
    %963 = vmatpush.msra.mxu0 0.0
    %964 = vmatpush.msra.mxu0 0.0
    %965 = vmatpush.msra.mxu0 0.0
    %966 = vmatpush.msra.mxu0 0.0
    %967 = vmatpush.msra.mxu0 0.0
    %968 = vmatpush.msra.mxu0 0.0
    %969 = vmatpush.msra.mxu0 0.0
    %970 = vmatpush.msra.mxu0 0.0
    %971 = vmatpush.msra.mxu0 0.0
    %972 = vmatpush.msra.mxu0 %v954
    %973 = vmatpush.msra.mxu0 %v953
    %974 = vmatpush.msra.mxu0 %v952
    %975 = vmatpush.msra.mxu0 %v951
    %976 = vmatmul.f32.gmra.mxu0 %v219
    %v977 = vpop.f32.mrf.mxu0
    %v978 = vadd.f32 %v958, %v977
    %979 = vdwg.mxu0
    %v980 = vadd.f32 %v779, %v806
    %v981 = vsub.f32 0.0, %v980
    %v982 = vmul.f32 %v981, 1.442695
    %v983 = vpow.pop %v982
    %v984 = vadd.f32 %v983, 1.0
    %v985 = vrcp.pop %v984
    %v986 = vmul.f32 %v984, %v985
    %v987 = vsub.f32 1.0, %v986
    %v988 = vmul.f32 %v985, %v987
    %v989 = vadd.f32 %v985, %v988
    %vm990 = vweird.f32 %v984
    %vm991 = vweird.f32 %v985
    %vm992 = vmor %vm990, %vm991
    %v993 = vsel %vm992, %v985, %v989
    %v994 = vand.u32 2147483647, %v984
    %vm995 = vcmp.eq.f32.partialorder %v994, 8.507059e+37
    %v996 = vand.u32 %v984, 2147483648
    %v997 = vor.u32 1.1754944e-38, %v996
    %v998 = vsel %vm995, %v997, %v993
    %v999 = vmul.f32 1.0, %v998
    %v1000 = vadd.f32 %v863, %v892
    %v1001 = vsub.f32 0.0, %v1000
    %v1002 = vmul.f32 %v1001, 1.442695
    %v1003 = vpow.pop %v1002
    %v1004 = vadd.f32 %v1003, 1.0
    %v1005 = vrcp.pop %v1004
    %v1006 = vmul.f32 %v1004, %v1005
    %v1007 = vsub.f32 1.0, %v1006
    %v1008 = vmul.f32 %v1005, %v1007
    %v1009 = vadd.f32 %v1005, %v1008
    %vm1010 = vweird.f32 %v1004
    %vm1011 = vweird.f32 %v1005
    %vm1012 = vmor %vm1010, %vm1011
    %v1013 = vsel %vm1012, %v1005, %v1009
    %v1014 = vand.u32 2147483647, %v1004
    %vm1015 = vcmp.eq.f32.partialorder %v1014, 8.507059e+37
    %v1016 = vand.u32 %v1004, 2147483648
    %v1017 = vor.u32 1.1754944e-38, %v1016
    %v1018 = vsel %vm1015, %v1017, %v1013
    %v1019 = vmul.f32 1.0, %v1018
    %v1020 = vmul.f32 %v999, %v978
    %v1021 = vadd.f32 %v949, %v1020
    %v1022 = vtanh.pop %v1021
    %v1023 = vsub.f32 1.0, %v1019
    %v1024 = vmul.f32 %v1023, %v1022
    %v1025 = vmul.f32 %v1019, %v159
    %v1026 = vadd.f32 %v1024, %v1025
    %v1027 = vld [vmem:[%s13] sm:$0xff]
    %v1028 = vld [vmem:[%s13 + $0x8] sm:$0xff]
    %v1029 = vld [vmem:[%s13 + $0x10] sm:$0xff]
    %v1030 = vld [vmem:[%s13 + $0x18] sm:$0xff]
    %v1031 = vld [vmem:[%s14] sm:$0x1]
    %v1033 = vperm.slane %v1031, 0
    %v1036 = vsel %vm217, %v1026, 0
    %1038 = vmatpush.msra.mxu0 0.0
    %1039 = vmatpush.msra.mxu0 0.0
    %1040 = vmatpush.msra.mxu0 0.0
    %1041 = vmatpush.msra.mxu0 0.0
    %1042 = vmatpush.msra.mxu0 0.0
    %1043 = vmatpush.msra.mxu0 0.0
    %1044 = vmatpush.msra.mxu0 0.0
    %1045 = vmatpush.msra.mxu0 0.0
    %1046 = vmatpush.msra.mxu0 0.0
    %1047 = vmatpush.msra.mxu0 0.0
    %1048 = vmatpush.msra.mxu0 0.0
    %1049 = vmatpush.msra.mxu0 0.0
    %1050 = vmatpush.msra.mxu0 %v1030
    %1051 = vmatpush.msra.mxu0 %v1029
    %1052 = vmatpush.msra.mxu0 %v1028
    %1053 = vmatpush.msra.mxu0 %v1027
    %1054 = vmatmul.f32.gmra.mxu0 %v1036
    %v1055 = vpop.f32.mrf.mxu0
    %v1056 = vadd.f32 %v1033, %v1055
    %1057 = vdwg.mxu0
    %1058 = vst.msk [vmem:[#allocation14] sm:$0xff] %vm180, %v1056
    %1059 = vst.msk [vmem:[#allocation15] sm:$0xff] %vm217, %v1026
    // Predicated region
    $region90: #{tpu_custom_call.1} parent=1 // pred_check
      _
    $region91: #{tpu_custom_call.1} parent=1 // pred_check_branch
      %1061 = sbr.rel (0) target = $region93
    $region92: #{tpu_custom_call.1} parent=1 // pred_region
      %1063 = vsyncadd [#allocation4], 0
      %s1065 = sshll.u32 [#allocation14], 4
      %s1066 = int_to_ptr.vmem [resolvable:$true] %s1065
      %s1067 = sshll.u32 %s15, 4
      %s1068 = int_to_ptr.hbm [resolvable:$true] %s1067
      %1070 = dma.vmem_to_hbm [thread:$0]  %s1066, 128, %s1068, [#allocation4]
    $region93: #{tpu_custom_call.1} parent=1 // pred_fallthru
      _
    // Predicated region
    $region94: #{tpu_custom_call.1} parent=1 // pred_check
      _
    $region95: #{tpu_custom_call.1} parent=1 // pred_check_branch
      %1072 = sbr.rel (0) target = $region97
    $region96: #{tpu_custom_call.1} parent=1 // pred_region
      %1074 = vsyncadd [#allocation16], 0
      %s1076 = sshll.u32 [#allocation15], 4
      %s1077 = int_to_ptr.vmem [resolvable:$true] %s1076
      %s1078 = sshll.u32 %s16, 4
      %s1079 = int_to_ptr.hbm [resolvable:$true] %s1078
      %1081 = dma.vmem_to_hbm [thread:$0]  %s1077, 128, %s1079, [#allocation16]
    $region97: #{tpu_custom_call.1} parent=1 // pred_fallthru
      _
    // Predicated region
    $region98: #{tpu_custom_call.1} parent=1 // pred_check
      _
    $region99: #{tpu_custom_call.1} parent=1 // pred_check_branch
      %1083 = sbr.rel (0) target = $region101
    $region100: #{tpu_custom_call.1} parent=1 // pred_region
      %1085 = dma.done [#allocation4], 128
    $region101: #{tpu_custom_call.1} parent=1 // pred_fallthru
      _
    // Predicated region
    $region102: #{tpu_custom_call.1} parent=1 // pred_check
      _
    $region103: #{tpu_custom_call.1} parent=1 // pred_check_branch
      %1087 = sbr.rel (0) target = $region105
    $region104: #{tpu_custom_call.1} parent=1 // pred_region
      %1089 = dma.done [#allocation16], 128
    $region105: #{tpu_custom_call.1} parent=1 // pred_fallthru
      _
    %1090 = vsyncpa [#allocation3], 1
    %1091 = vsyncpa [#allocation6], 1
    %1092 = vsyncpa [#allocation9], 1
    %1093 = vsyncpa [#allocation12], 1
    %1094 = vsyncpa [#allocation4], 1
    %1095 = vsyncpa [#allocation16], 1

</llo_original>
